<compile_context>
chip_gen: v5e
topology: v5e:2x2
jax: 0.10.0
libtpu: 0.0.40
codegen_flags: <defaults>
</compile_context>

<pallas_src>
import functools

import jax
import jax.numpy as jnp
from jax import lax
from jax.experimental import pallas as pl
from jax.experimental.pallas import tpu as pltpu


def _round_up(a, b):
    return (a + b - 1) // b * b


def discon_ae_kernel(
    x_ref,        # (tb, D_in)          input tile (compute dtype)
    w_enc_ref,    # (D_in, K*H + K)     [expert encoders | classifier] fused weight
    b_enc_ref,    # (1,    K*H + K)     fused bias (f32)
    w_dec_ref,    # (K*H + K, D_in)     [stacked decoder weights ; decoder biases]
    meta_ref,     # (2,    K*H + K)     row0: expert id of each column, row1: is-hidden flag
    recon_ref,    # (tb, D_in)          out: routed reconstruction
    assign_ref,   # (tb, 1) int32       out: expert assignment
    *, K, KH,
):
    x = x_ref[...]

    # ---- single fused matmul: all K expert encoders + classifier (f32 accumulation) ----
    enc = (jnp.dot(x, w_enc_ref[...], preferred_element_type=jnp.float32)
           + b_enc_ref[...])                                  # (tb, K*H + K) f32

    # ---- assignment = argmax over classifier logits (first maximal index, like torch.max) ----
    logits = enc[:, KH:]                                      # (tb, K); KH is a 128 multiple
    k_iota = lax.broadcasted_iota(jnp.int32, logits.shape, 1)
    mx = jnp.max(logits, axis=1, keepdims=True)
    # NOTE: NaN logits would make every compare False -> assign == K (out of range) and an
    # all-zero reconstruction; torch.max would return an index.  Benign for finite inputs.
    assign = jnp.min(jnp.where(logits == mx, k_iota, K), axis=1, keepdims=True)  # (tb, 1)
    assign_ref[...] = assign

    # ---- build the fused decoder input in place of enc:                         ----
    # ----   hidden columns of the assigned expert -> relu(enc), others -> 0      ----
    # ----   classifier column of the assigned expert -> 1.0 (one-hot), others 0  ----
    col_expert = meta_ref[0:1, :]                             # (1, K*H+K) int32
    is_hidden = meta_ref[1:2, :] == 1                         # (1, K*H+K) bool
    val = jnp.where(is_hidden, jnp.maximum(enc, 0.0), 1.0)    # relu hidden / one-hot ones
    dec_in = jnp.where(col_expert == assign, val, 0.0)        # (tb, K*H+K) f32

    # ---- ONE fused decoder matmul (weights + per-expert bias rows) ----
    recon = jnp.dot(dec_in.astype(w_dec_ref.dtype), w_dec_ref[...],
                    preferred_element_type=jnp.float32)
    recon_ref[...] = recon.astype(recon_ref.dtype)


def prepare_params(params, *, compute_dtype=jnp.float32):
    """One-time fusion of per-module weights into the kernel's packed layout."""
    K, D_in, H = params["we"].shape
    KH = K * H
    # Layout guards: keep the logits slice / hidden slice on vreg (128-lane) boundaries.
    assert D_in % 128 == 0, f"D_in={D_in} must be a multiple of 128 for lane-aligned tiles"
    assert KH % 128 == 0, f"K*H={KH} must be a multiple of 128 so enc[:, K*H:] is lane-aligned"

    w_enc = jnp.concatenate(
        [jnp.transpose(params["we"], (1, 0, 2)).reshape(D_in, KH),   # expert encoders
         params["wc"]],                                              # classifier
        axis=1,
    ).astype(compute_dtype)
    b_enc = jnp.concatenate(
        [params["be"].reshape(1, KH), params["bc"].reshape(1, K)], axis=1
    ).astype(jnp.float32)                                            # biases stay f32

    # Decoder weights with the per-expert bias folded in as K extra rows; those rows are
    # driven by the one-hot columns of dec_in inside the kernel.
    w_dec = jnp.concatenate(
        [params["wd"].reshape(KH, D_in), params["bd"]], axis=0
    ).astype(compute_dtype)                                          # (K*H + K, D_in)

    # Per-column metadata, computed once (no in-kernel // H, no power-of-two requirement).
    col = jnp.arange(KH + K, dtype=jnp.int32)
    col_expert = jnp.where(col < KH, col // H, col - KH)
    is_hidden = (col < KH).astype(jnp.int32)
    meta = jnp.stack([col_expert, is_hidden], axis=0)                # (2, K*H + K) int32

    return {"w_enc": w_enc, "b_enc": b_enc, "w_dec": w_dec, "meta": meta,
            "K": K, "H": H, "D_in": D_in, "dtype": jnp.dtype(compute_dtype)}


def discon_ae_forward(x, fused, *, tb=256):
    """Returns (x_out, assignment) matching DisconAE_V1.forward(x, random_assign=False)."""
    B, D_in = x.shape
    K, H = fused["K"], fused["H"]
    KH = K * H
    KHK = KH + K
    cdtype = fused["dtype"]
    x = x.astype(cdtype)

    # Tile the batch: multiple of 8 rows (16 for bf16), padded up to a tile multiple.
    # For large production batches keep B_pad // tb >= ~8 so megacore gets work.
    row_align = 16 if cdtype == jnp.dtype(jnp.bfloat16) else 8
    tb = max(row_align, (min(tb, _round_up(B, row_align)) // row_align) * row_align)
    B_pad = _round_up(B, tb)
    if B_pad != B:
        x = jnp.pad(x, ((0, B_pad - B), (0, 0)))
    grid = (B_pad // tb,)

    resident = lambda shape: pl.BlockSpec(shape, lambda i: (0, 0))   # weights stay in VMEM

    flops = 4 * B_pad * D_in * KHK                                    # encoder + decoder matmuls
    bytes_accessed = int(
        2 * B_pad * D_in * cdtype.itemsize                            # x in + recon out
        + B_pad * 4                                                   # assignment out
        + fused["w_enc"].nbytes + fused["b_enc"].nbytes
        + fused["w_dec"].nbytes + fused["meta"].nbytes
    )

    recon, assign = pl.pallas_call(
        functools.partial(discon_ae_kernel, K=K, KH=KH),
        out_shape=(
            jax.ShapeDtypeStruct((B_pad, D_in), cdtype),
            jax.ShapeDtypeStruct((B_pad, 1), jnp.int32),
        ),
        grid=grid,
        in_specs=[
            pl.BlockSpec((tb, D_in), lambda i: (i, 0)),   # x tile (pipelined)
            resident((D_in, KHK)),
            resident((1, KHK)),
            resident((KHK, D_in)),
            resident((2, KHK)),
        ],
        out_specs=(
            pl.BlockSpec((tb, D_in), lambda i: (i, 0)),
            pl.BlockSpec((tb, 1), lambda i: (i, 0)),
        ),
        compiler_params=pltpu.CompilerParams(
            dimension_semantics=("parallel",),
            vmem_limit_bytes=32 * 1024 * 1024,            # safe on v5e/v6e/v7x
        ),
        cost_estimate=pl.CostEstimate(flops=flops, transcendentals=0,
                                      bytes_accessed=bytes_accessed),
    )(x, fused["w_enc"], fused["b_enc"], fused["w_dec"], fused["meta"])
    return recon[:B], assign[:B, 0]


def reference_forward(x, params):
    """Pure-JAX mirror of DisconAE_V1.forward with Linear/ReLU/Linear AEs (f32)."""
    logits = x @ params["wc"] + params["bc"]                       # (B, K)
    assign = jnp.argmax(logits, axis=1)                            # (B,)
    h = jnp.maximum(jnp.einsum("bd,kdh->kbh", x, params["we"])
                    + params["be"][:, None, :], 0.0)               # (K, B, H)
    recon_all = (jnp.einsum("kbh,khd->kbd", h, params["wd"])
                 + params["bd"][:, None, :])                       # (K, B, D_in)
    x_out = recon_all[assign, jnp.arange(x.shape[0])]              # per-row expert select
    return x_out, assign


if __name__ == "__main__":
    key = jax.random.PRNGKey(0)
    B, D_in, K, H = 512, 128, 8, 32   # batch, input dim, #autoencoders, AE hidden dim

    keys = jax.random.split(key, 7)
    x = jax.random.normal(keys[0], (B, D_in), dtype=jnp.float32)
    params = {
        "wc": jax.random.normal(keys[1], (D_in, K), dtype=jnp.float32) * 0.1,
        "bc": jax.random.normal(keys[2], (K,), dtype=jnp.float32) * 0.1,
        "we": jax.random.normal(keys[3], (K, D_in, H), dtype=jnp.float32) * 0.1,
        "be": jax.random.normal(keys[4], (K, H), dtype=jnp.float32) * 0.1,
        "wd": jax.random.normal(keys[5], (K, H, D_in), dtype=jnp.float32) * 0.1,
        "bd": jax.random.normal(keys[6], (K, D_in), dtype=jnp.float32) * 0.1,
    }

    recon_ref, assign_ref = reference_forward(x, params)

    # --- f32 path: strict numerical check -----------------------------------------------
    fused32 = prepare_params(params, compute_dtype=jnp.float32)
    recon, assign = discon_ae_forward(x, fused32, tb=256)
    jax.block_until_ready((recon, assign))
    assert jnp.array_equal(assign, assign_ref), "assignment mismatch (f32)"
    assert jnp.allclose(recon, recon_ref, atol=1e-4, rtol=1e-4), "recon mismatch (f32)"

    # --- non-tile-multiple batch exercises the padding path ------------------------------
    recon_p, assign_p = discon_ae_forward(x[:300], fused32, tb=256)
    jax.block_until_ready((recon_p, assign_p))
    assert jnp.array_equal(assign_p, assign_ref[:300]), "assignment mismatch (padded batch)"
    assert jnp.allclose(recon_p, recon_ref[:300], atol=1e-4, rtol=1e-4), "recon mismatch (padded batch)"

    # --- bf16 production dtype: lenient check (argmax ties can flip under bf16 rounding) -
    fused16 = prepare_params(params, compute_dtype=jnp.bfloat16)
    recon_bf, assign_bf = discon_ae_forward(x, fused16, tb=256)
    jax.block_until_ready((recon_bf, assign_bf))
    recon_bf32 = recon_bf.astype(jnp.float32)
    assert jnp.all(jnp.isfinite(recon_bf32)), "non-finite recon (bf16)"
    assert jnp.all((assign_bf >= 0) & (assign_bf < K)), "assignment out of range (bf16)"
    agree = assign_bf == assign_ref
    assert jnp.mean(agree.astype(jnp.float32)) > 0.9, "too many bf16 routing flips"
    assert jnp.allclose(jnp.where(agree[:, None], recon_bf32, recon_ref),
                        recon_ref, atol=1e-1, rtol=1e-1), "recon mismatch (bf16, agreeing rows)"

    print("KERNEL_OK")
</pallas_src>

<mosaic_0001>
module attributes {stable_mosaic.version = 11 : i64} {
  func.func @discon_ae_kernel(%arg0: i32, %arg1: memref<256x128xf32, #tpu.memory_space<vmem>>, %arg2: memref<128x264xf32, #tpu.memory_space<vmem>>, %arg3: memref<1x264xf32, #tpu.memory_space<vmem>>, %arg4: memref<264x128xf32, #tpu.memory_space<vmem>>, %arg5: memref<2x264xi32, #tpu.memory_space<vmem>>, %arg6: memref<256x128xf32, #tpu.memory_space<vmem>>, %arg7: memref<256x1xi32, #tpu.memory_space<vmem>>) attributes {dimension_semantics = [#tpu.dimension_semantics<parallel>], iteration_bounds = array<i64: 2>, scalar_prefetch = 0 : i64, scratch_operands = 0 : i64, tpu.core_type = #tpu.core_type<tc>, window_params = [{transform_indices = @transform_0, window_bounds = array<i64: 256, 128>}, {pipeline_mode = #tpu.pipeline_mode<synchronous>, transform_indices = @transform_1, window_bounds = array<i64: 128, 264>}, {pipeline_mode = #tpu.pipeline_mode<synchronous>, transform_indices = @transform_2, window_bounds = array<i64: 1, 264>}, {pipeline_mode = #tpu.pipeline_mode<synchronous>, transform_indices = @transform_3, window_bounds = array<i64: 264, 128>}, {pipeline_mode = #tpu.pipeline_mode<synchronous>, transform_indices = @transform_4, window_bounds = array<i64: 2, 264>}, {transform_indices = @transform_5, window_bounds = array<i64: 256, 128>}, {transform_indices = @transform_6, window_bounds = array<i64: 256, 1>}]} {
    %c0 = arith.constant 0 : index
    %c0_0 = arith.constant 0 : index
    %0 = vector.load %arg1[%c0, %c0_0] : memref<256x128xf32, #tpu.memory_space<vmem>>, vector<256x128xf32>
    %c0_1 = arith.constant 0 : index
    %c0_2 = arith.constant 0 : index
    %1 = vector.load %arg2[%c0_1, %c0_2] : memref<128x264xf32, #tpu.memory_space<vmem>>, vector<128x264xf32>
    %cst = arith.constant dense<0.000000e+00> : vector<256x264xf32>
    %2 = tpu.matmul %0, %1, %cst {dimension_numbers = #tpu.dot_dimension_numbers<[1], [0], [0], [1], [0, 0, 1, 1], [], []>} : vector<256x128xf32>, vector<128x264xf32>, vector<256x264xf32> -> vector<256x264xf32>
    %c0_3 = arith.constant 0 : index
    %c0_4 = arith.constant 0 : index
    %3 = vector.load %arg3[%c0_3, %c0_4] : memref<1x264xf32, #tpu.memory_space<vmem>>, vector<1x264xf32>
    %4 = vector.broadcast %3 : vector<1x264xf32> to vector<256x264xf32>
    %5 = arith.addf %2, %4 : vector<256x264xf32>
    %6 = vector.extract_strided_slice %5 {offsets = [0, 256], sizes = [256, 8], strides = [1, 1]} : vector<256x264xf32> to vector<256x8xf32>
    %7 = tpu.iota {dimensions = array<i32: 1>} : vector<256x8xi32>
    %cst_5 = arith.constant dense<0xFF800000> : vector<256xf32>
    %8 = vector.multi_reduction <maximumf>, %6, %cst_5 [1] : vector<256x8xf32> to vector<256xf32>
    %9 = vector.shape_cast %8 : vector<256xf32> to vector<256x1xf32>
    %10 = vector.broadcast %9 : vector<256x1xf32> to vector<256x8xf32>
    %11 = arith.cmpf oeq, %6, %10 : vector<256x8xf32>
    %c8_i32 = arith.constant 8 : i32
    %12 = vector.broadcast %c8_i32 : i32 to vector<256x8xi32>
    %13 = arith.select %11, %7, %12 : vector<256x8xi1>, vector<256x8xi32>
    %cst_6 = arith.constant dense<2147483647> : vector<256xi32>
    %14 = vector.multi_reduction <minsi>, %13, %cst_6 [1] : vector<256x8xi32> to vector<256xi32>
    %15 = vector.shape_cast %14 : vector<256xi32> to vector<256x1xi32>
    %c0_7 = arith.constant 0 : index
    %c0_8 = arith.constant 0 : index
    %16 = vector.load %arg7[%c0_7, %c0_8] : memref<256x1xi32, #tpu.memory_space<vmem>>, vector<256x1xi32>
    tpu.vector_store %arg7[%c0_7, %c0_8], %15 {strides = array<i32>} : memref<256x1xi32, #tpu.memory_space<vmem>>, vector<256x1xi32>,
    %c0_9 = arith.constant 0 : index
    %c0_10 = arith.constant 0 : index
    %17 = vector.load %arg5[%c0_9, %c0_10] : memref<2x264xi32, #tpu.memory_space<vmem>>, vector<1x264xi32>
    %c1 = arith.constant 1 : index
    %c0_11 = arith.constant 0 : index
    %18 = vector.load %arg5[%c1, %c0_11] : memref<2x264xi32, #tpu.memory_space<vmem>>, vector<1x264xi32>
    %c1_i32 = arith.constant 1 : i32
    %19 = vector.broadcast %c1_i32 : i32 to vector<1x264xi32>
    %20 = arith.cmpi eq, %18, %19 : vector<1x264xi32>
    %cst_12 = arith.constant 0.000000e+00 : f32
    %21 = vector.broadcast %cst_12 : f32 to vector<256x264xf32>
    %22 = arith.maximumf %5, %21 : vector<256x264xf32>
    %cst_13 = arith.constant 1.000000e+00 : f32
    %23 = vector.shape_cast %20 : vector<1x264xi1> to vector<1x264xi1>
    %24 = vector.broadcast %23 : vector<1x264xi1> to vector<256x264xi1>
    %25 = vector.broadcast %cst_13 : f32 to vector<256x264xf32>
    %26 = arith.select %24, %22, %25 : vector<256x264xi1>, vector<256x264xf32>
    %27 = vector.broadcast %17 : vector<1x264xi32> to vector<256x264xi32>
    %28 = vector.broadcast %15 : vector<256x1xi32> to vector<256x264xi32>
    %29 = arith.cmpi eq, %27, %28 : vector<256x264xi32>
    %cst_14 = arith.constant 0.000000e+00 : f32
    %30 = vector.broadcast %cst_14 : f32 to vector<256x264xf32>
    %31 = arith.select %29, %26, %30 : vector<256x264xi1>, vector<256x264xf32>
    %c0_15 = arith.constant 0 : index
    %c0_16 = arith.constant 0 : index
    %32 = vector.load %arg4[%c0_15, %c0_16] : memref<264x128xf32, #tpu.memory_space<vmem>>, vector<264x128xf32>
    %cst_17 = arith.constant dense<0.000000e+00> : vector<256x128xf32>
    %33 = tpu.matmul %31, %32, %cst_17 {dimension_numbers = #tpu.dot_dimension_numbers<[1], [0], [0], [1], [0, 0, 1, 1], [], []>} : vector<256x264xf32>, vector<264x128xf32>, vector<256x128xf32> -> vector<256x128xf32>
    %c0_18 = arith.constant 0 : index
    %c0_19 = arith.constant 0 : index
    %34 = vector.load %arg6[%c0_18, %c0_19] : memref<256x128xf32, #tpu.memory_space<vmem>>, vector<256x128xf32>
    tpu.vector_store %arg6[%c0_18, %c0_19], %33 {strides = array<i32>} : memref<256x128xf32, #tpu.memory_space<vmem>>, vector<256x128xf32>,
    return
  }
  func.func @transform_0(%arg0: i32) -> (i32, i32) {
    %c0_i32 = arith.constant 0 : i32
    %c0_i32_0 = arith.constant 0 : i32
    return %arg0, %c0_i32 : i32, i32
  }
  func.func @transform_1(%arg0: i32) -> (i32, i32) {
    %c0_i32 = arith.constant 0 : i32
    %c0_i32_0 = arith.constant 0 : i32
    %c0_i32_1 = arith.constant 0 : i32
    return %c0_i32, %c0_i32_0 : i32, i32
  }
  func.func @transform_2(%arg0: i32) -> (i32, i32) {
    %c0_i32 = arith.constant 0 : i32
    %c0_i32_0 = arith.constant 0 : i32
    %c0_i32_1 = arith.constant 0 : i32
    return %c0_i32, %c0_i32_0 : i32, i32
  }
  func.func @transform_3(%arg0: i32) -> (i32, i32) {
    %c0_i32 = arith.constant 0 : i32
    %c0_i32_0 = arith.constant 0 : i32
    %c0_i32_1 = arith.constant 0 : i32
    return %c0_i32, %c0_i32_0 : i32, i32
  }
  func.func @transform_4(%arg0: i32) -> (i32, i32) {
    %c0_i32 = arith.constant 0 : i32
    %c0_i32_0 = arith.constant 0 : i32
    %c0_i32_1 = arith.constant 0 : i32
    return %c0_i32, %c0_i32_0 : i32, i32
  }
  func.func @transform_5(%arg0: i32) -> (i32, i32) {
    %c0_i32 = arith.constant 0 : i32
    %c0_i32_0 = arith.constant 0 : i32
    return %arg0, %c0_i32 : i32, i32
  }
  func.func @transform_6(%arg0: i32) -> (i32, i32) {
    %c0_i32 = arith.constant 0 : i32
    %c0_i32_0 = arith.constant 0 : i32
    return %arg0, %c0_i32 : i32, i32
  }
}

</mosaic_0001>

<llo_original>
// kernel: tpu_custom_call.1
$region0: #{tpu_custom_call.1}
  #allocation0 [shape = 'u32[]', space=smem, size = 0x4, offset = 0x4, fixed_abs, tag = 'smem constant byte address 0x4 - core index']
  #allocation1 [shape = 'u32[72,128]{1,0:T(1,128)}', space=vmem, size = 0x9000, scoped, tag = 'internal scratch']
  %s0 = inlined_call_operand.vmem [shape: f32[512,128], index: 0, kind: input, shape index: {}]
  %s1 = inlined_call_operand.vmem [shape: f32[128,264], index: 1, kind: input, shape index: {}]
  %s2 = inlined_call_operand.vmem [shape: f32[1,264], index: 2, kind: input, shape index: {}]
  %s3 = inlined_call_operand.hbm [shape: f32[264,128], index: 3, kind: input, shape index: {}]
  %s4 = inlined_call_operand.vmem [shape: s32[2,264], index: 4, kind: input, shape index: {}]
  %s5 = inlined_call_operand.hbm [shape: f32[512,128], index: 5, kind: output, shape index: {0}]
  %s6 = inlined_call_operand.vmem [shape: s32[512,1], index: 6, kind: output, shape index: {1}]
  %7 = xla_tuple %s5, %s6
  %s8 = sld [smem:[#allocation0]]
  $region65: #{tpu_custom_call.1} parent=0
    _
  %s10 = ssub.s32 1, %s8
  %s11 = scalar_select 0, %s10, %s8
  $region1: #{tpu_custom_call.1} parent=0
    #allocation2 [shape = 'u8[135168]{0}', space=vmem, size = 0x21000, scoped, tag = 'input window, operand 3, single buffered']
    #allocation3 [shape = 's32[2]{0}', space=sflag, size = 0x8, scoped, tag = 'scoped memory for tpu_custom_call.1']
    #allocation4 [shape = 's32[2]{0}', space=sflag, size = 0x8, scoped, tag = 'scoped memory for tpu_custom_call.1']
    #allocation5 [shape = 'u8[262144]{0}', space=vmem, size = 0x40000, scoped, tag = 'output window, operand 0']
    %12 = vsyncpa [#allocation3], 0
    %13 = vsyncpa [#allocation4], 0
    %s14 = scalar_lea.sflag [#allocation4], 1
    %15 = vsyncpa %s14, 0
    loop: start=0, step=1, limit=4
    $region2: #{tpu_custom_call.1} parent=1 // loop_pre_header
      _
    $region3: #{tpu_custom_call.1} parent=1 // loop_header
      %s17 = sphi 0, %s21
      %p18 = scmp.ge.s32.totalorder %s17, 4
      %s27 = sphi 0, %s29
      %s30 = sphi 0, %s27
      %s31 = sphi 0, %s30
      %s47 = sphi 0, %s31
      %s51 = sphi 0, %s51
      %s53 = sphi 0, %s51
      %s54 = sphi 0, %s53
      %s68 = sphi 0, %s54
      %s72 = sphi 0, %s72
      %s74 = sphi 0, %s72
      %s75 = sphi 0, %s74
      %s89 = sphi 0, %s75
      %s93 = sphi 0, %s93
      %s95 = sphi 0, %s93
      %s96 = sphi 0, %s95
      %s110 = sphi 0, %s96
      %s114 = sphi 0, %s114
      %s116 = sphi 0, %s114
      %s117 = sphi 0, %s116
      %s131 = sphi 0, %s117
      %s137 = sphi 0, %s139
      %s140 = sphi 0, %s137
      %s141 = sphi 0, %s140
      %s157 = sphi 0, %s141
      %s163 = sphi 0, %s165
      %s166 = sphi 0, %s163
      %s167 = sphi 0, %s166
      %s183 = sphi 0, %s167
    $region4: #{tpu_custom_call.1} parent=1 // loop_header_branch
      %20 = sbr.rel (%p18) target = $region8
    $region5: #{tpu_custom_call.1} parent=1 // loop_body
      %s22 = ssub.s32 %s17, 1
      %s23 = ssub.s32 %s17, 2
      %s24 = sadd.s32 %s17, 1
      %s25 = ssub.s32 %s17, %s24
      %p26 = scmp.eq.s32.totalorder %s25, 0
      %s28 = sadd.s32 %s27, 1
      %s29 = scalar_select %p26, %s27, %s28
      %p32 = pneg %p26
      %p33 = scmp.eq.s32.totalorder %s17, 1
      %p34 = por %p32, %p33
      %p35 = scmp.ne.s32.totalorder %s27, %s30
      %p36 = scmp.eq.s32.totalorder %s17, 0
      %p37 = por %p35, %p36
      %p38 = scmp.ne.s32.totalorder %s27, %s30
      %p39 = scmp.eq.s32.totalorder %s22, 1
      %p40 = por %p38, %p39
      %p41 = scmp.ne.s32.totalorder %s30, %s31
      %p42 = scmp.eq.s32.totalorder %s22, 0
      %p43 = por %p41, %p42
      %p44 = scmp.ne.s32.totalorder %s30, %s31
      %p45 = scmp.eq.s32.totalorder %s23, 1
      %p46 = por %p44, %p45
      %p48 = scmp.ne.s32.totalorder %s31, %s47
      %p49 = scmp.eq.s32.totalorder %s23, 0
      %p50 = por %p48, %p49
      %s52 = sadd.s32 %s51, 1
      %p55 = scmp.eq.s32.totalorder %s17, 1
      %p56 = scmp.ne.s32.totalorder %s51, %s53
      %p57 = scmp.eq.s32.totalorder %s17, 0
      %p58 = por %p56, %p57
      %p59 = scmp.ne.s32.totalorder %s51, %s53
      %p60 = scmp.eq.s32.totalorder %s22, 1
      %p61 = por %p59, %p60
      %p62 = scmp.ne.s32.totalorder %s53, %s54
      %p63 = scmp.eq.s32.totalorder %s22, 0
      %p64 = por %p62, %p63
      %p65 = scmp.ne.s32.totalorder %s53, %s54
      %p66 = scmp.eq.s32.totalorder %s23, 1
      %p67 = por %p65, %p66
      %p69 = scmp.ne.s32.totalorder %s54, %s68
      %p70 = scmp.eq.s32.totalorder %s23, 0
      %p71 = por %p69, %p70
      %s73 = sadd.s32 %s72, 1
      %p76 = scmp.eq.s32.totalorder %s17, 1
      %p77 = scmp.ne.s32.totalorder %s72, %s74
      %p78 = scmp.eq.s32.totalorder %s17, 0
      %p79 = por %p77, %p78
      %p80 = scmp.ne.s32.totalorder %s72, %s74
      %p81 = scmp.eq.s32.totalorder %s22, 1
      %p82 = por %p80, %p81
      %p83 = scmp.ne.s32.totalorder %s74, %s75
      %p84 = scmp.eq.s32.totalorder %s22, 0
      %p85 = por %p83, %p84
      %p86 = scmp.ne.s32.totalorder %s74, %s75
      %p87 = scmp.eq.s32.totalorder %s23, 1
      %p88 = por %p86, %p87
      %p90 = scmp.ne.s32.totalorder %s75, %s89
      %p91 = scmp.eq.s32.totalorder %s23, 0
      %p92 = por %p90, %p91
      %s94 = sadd.s32 %s93, 1
      %p97 = scmp.eq.s32.totalorder %s17, 1
      %p98 = scmp.ne.s32.totalorder %s93, %s95
      %p99 = scmp.eq.s32.totalorder %s17, 0
      %p100 = por %p98, %p99
      %p101 = scmp.ne.s32.totalorder %s93, %s95
      %p102 = scmp.eq.s32.totalorder %s22, 1
      %p103 = por %p101, %p102
      %p104 = scmp.ne.s32.totalorder %s95, %s96
      %p105 = scmp.eq.s32.totalorder %s22, 0
      %p106 = por %p104, %p105
      %p107 = scmp.ne.s32.totalorder %s95, %s96
      %p108 = scmp.eq.s32.totalorder %s23, 1
      %p109 = por %p107, %p108
      %p111 = scmp.ne.s32.totalorder %s96, %s110
      %p112 = scmp.eq.s32.totalorder %s23, 0
      %p113 = por %p111, %p112
      %s115 = sadd.s32 %s114, 1
      %p118 = scmp.eq.s32.totalorder %s17, 1
      %p119 = scmp.ne.s32.totalorder %s114, %s116
      %p120 = scmp.eq.s32.totalorder %s17, 0
      %p121 = por %p119, %p120
      %p122 = scmp.ne.s32.totalorder %s114, %s116
      %p123 = scmp.eq.s32.totalorder %s22, 1
      %p124 = por %p122, %p123
      %p125 = scmp.ne.s32.totalorder %s116, %s117
      %p126 = scmp.eq.s32.totalorder %s22, 0
      %p127 = por %p125, %p126
      %p128 = scmp.ne.s32.totalorder %s116, %s117
      %p129 = scmp.eq.s32.totalorder %s23, 1
      %p130 = por %p128, %p129
      %p132 = scmp.ne.s32.totalorder %s117, %s131
      %p133 = scmp.eq.s32.totalorder %s23, 0
      %p134 = por %p132, %p133
      %s135 = ssub.s32 %s17, %s24
      %p136 = scmp.eq.s32.totalorder %s135, 0
      %s138 = sadd.s32 %s137, 1
      %s139 = scalar_select %p136, %s137, %s138
      %p142 = pneg %p136
      %p143 = scmp.eq.s32.totalorder %s17, 1
      %p144 = por %p142, %p143
      %p145 = scmp.ne.s32.totalorder %s137, %s140
      %p146 = scmp.eq.s32.totalorder %s17, 0
      %p147 = por %p145, %p146
      %p148 = scmp.ne.s32.totalorder %s137, %s140
      %p149 = scmp.eq.s32.totalorder %s22, 1
      %p150 = por %p148, %p149
      %p151 = scmp.ne.s32.totalorder %s140, %s141
      %p152 = scmp.eq.s32.totalorder %s22, 0
      %p153 = por %p151, %p152
      %p154 = scmp.ne.s32.totalorder %s140, %s141
      %p155 = scmp.eq.s32.totalorder %s23, 1
      %p156 = por %p154, %p155
      %p158 = scmp.ne.s32.totalorder %s141, %s157
      %p159 = scmp.eq.s32.totalorder %s23, 0
      %p160 = por %p158, %p159
      %s161 = ssub.s32 %s17, %s24
      %p162 = scmp.eq.s32.totalorder %s161, 0
      %s164 = sadd.s32 %s163, 1
      %s165 = scalar_select %p162, %s163, %s164
      %p168 = pneg %p162
      %p169 = scmp.eq.s32.totalorder %s17, 1
      %p170 = por %p168, %p169
      %p171 = scmp.ne.s32.totalorder %s163, %s166
      %p172 = scmp.eq.s32.totalorder %s17, 0
      %p173 = por %p171, %p172
      %p174 = scmp.ne.s32.totalorder %s163, %s166
      %p175 = scmp.eq.s32.totalorder %s22, 1
      %p176 = por %p174, %p175
      %p177 = scmp.ne.s32.totalorder %s166, %s167
      %p178 = scmp.eq.s32.totalorder %s22, 0
      %p179 = por %p177, %p178
      %p180 = scmp.ne.s32.totalorder %s166, %s167
      %p181 = scmp.eq.s32.totalorder %s23, 1
      %p182 = por %p180, %p181
      %p184 = scmp.ne.s32.totalorder %s167, %s183
      %p185 = scmp.eq.s32.totalorder %s23, 0
      %p186 = por %p184, %p185
      %p187 = scmp.le.s32.totalorder 1, %s17
      %p188 = scmp.lt.s32.totalorder %s17, 3
      %p189 = pnand %p187, %p188
      %p190 = pneg %p189
      // Predicated region
      $region9: #{tpu_custom_call.1} parent=5 // pred_check
        _
      $region10: #{tpu_custom_call.1} parent=5 // pred_check_branch
        %192 = sbr.rel (%p189) target = $region12
      $region11: #{tpu_custom_call.1} parent=5 // pred_region
        %s193 = ssub.s32 %s17, 1
        // Predicated region
        $region13: #{tpu_custom_call.1} parent=11 // pred_check
          %p194 = pneg %p64
        $region14: #{tpu_custom_call.1} parent=11 // pred_check_branch
          %196 = sbr.rel (%p194) target = $region16
        $region15: #{tpu_custom_call.1} parent=11 // pred_region
          _
        $region16: #{tpu_custom_call.1} parent=11 // pred_fallthru
          _
        // Predicated region
        $region17: #{tpu_custom_call.1} parent=11 // pred_check
          %p197 = pneg %p85
        $region18: #{tpu_custom_call.1} parent=11 // pred_check_branch
          %199 = sbr.rel (%p197) target = $region20
        $region19: #{tpu_custom_call.1} parent=11 // pred_region
          _
        $region20: #{tpu_custom_call.1} parent=11 // pred_fallthru
          _
        // Predicated region
        $region21: #{tpu_custom_call.1} parent=11 // pred_check
          %p200 = pneg %p106
        $region22: #{tpu_custom_call.1} parent=11 // pred_check_branch
          %202 = sbr.rel (%p200) target = $region24
        $region23: #{tpu_custom_call.1} parent=11 // pred_region
          %204 = vsyncadd [#allocation3], 0
          %s205 = sshll.u32 %s3, 4
          %s206 = int_to_ptr.hbm [resolvable:$true] %s205
          %s207 = sshll.u32 [#allocation2], 4
          %s208 = int_to_ptr.vmem [resolvable:$true] %s207
          %213 = dma.hbm_to_vmem [thread:$0]  %s206, 4224, %s208, [#allocation3], 128, 128, 8
        $region24: #{tpu_custom_call.1} parent=11 // pred_fallthru
          _
        // Predicated region
        $region25: #{tpu_custom_call.1} parent=11 // pred_check
          %p214 = pneg %p127
        $region26: #{tpu_custom_call.1} parent=11 // pred_check_branch
          %216 = sbr.rel (%p214) target = $region28
        $region27: #{tpu_custom_call.1} parent=11 // pred_region
          _
        $region28: #{tpu_custom_call.1} parent=11 // pred_fallthru
          _
      $region12: #{tpu_custom_call.1} parent=5 // pred_fallthru
        _
      %p217 = scmp.lt.s32.totalorder %s17, 2
      // Predicated region
      $region29: #{tpu_custom_call.1} parent=5 // pred_check
        %p218 = pneg %p217
      $region30: #{tpu_custom_call.1} parent=5 // pred_check_branch
        %220 = sbr.rel (%p218) target = $region32
      $region31: #{tpu_custom_call.1} parent=5 // pred_region
        // Predicated region
        $region33: #{tpu_custom_call.1} parent=31 // pred_check
          %p221 = pneg %p37
        $region34: #{tpu_custom_call.1} parent=31 // pred_check_branch
          %223 = sbr.rel (%p221) target = $region36
        $region35: #{tpu_custom_call.1} parent=31 // pred_region
          %s224 = smul.u32 32, %s17
          %p225 = scmp.lt.s32.totalorder %s224, 63
          %s226 = scalar_select %p225, %s224, 63
          %s227 = smul.addr %s226, 8
          %s228 = scalar_lea.vmem %s0, %s227
          %s229 = smul.u32 32, %s17
        $region36: #{tpu_custom_call.1} parent=31 // pred_fallthru
          _
      $region32: #{tpu_custom_call.1} parent=5 // pred_fallthru
        _
      %p230 = scmp.le.s32.totalorder 1, %s17
      %p231 = scmp.lt.s32.totalorder %s17, 3
      %p232 = pnand %p230, %p231
      %p233 = pneg %p232
      // Predicated region
      $region37: #{tpu_custom_call.1} parent=5 // pred_check
        _
      $region38: #{tpu_custom_call.1} parent=5 // pred_check_branch
        %235 = sbr.rel (%p232) target = $region40
      $region39: #{tpu_custom_call.1} parent=5 // pred_region
        %s236 = ssub.s32 %s17, 1
        // Predicated region
        $region41: #{tpu_custom_call.1} parent=39 // pred_check
          %p237 = pneg %p106
        $region42: #{tpu_custom_call.1} parent=39 // pred_check_branch
          %239 = sbr.rel (%p237) target = $region44
        $region43: #{tpu_custom_call.1} parent=39 // pred_region
          %241 = dma.done [#allocation3], 4224
        $region44: #{tpu_custom_call.1} parent=39 // pred_fallthru
          _
        %s242 = smul.u32 32, %s22
        %p243 = scmp.lt.s32.totalorder %s242, 63
        %s244 = scalar_select %p243, %s242, 63
        %s245 = smul.addr %s244, 8
        %s246 = scalar_lea.vmem %s0, %s245
        %p247 = pneg %p43
        %p248 = pneg %p40
        %p249 = pneg %p64
        %p250 = pneg %p61
        %p251 = pneg %p85
        %p252 = pneg %p82
        %p253 = pneg %p106
        %p254 = pneg %p103
        %p255 = pneg %p127
        %p256 = pneg %p124
        %p257 = pneg %p153
        %p258 = pneg %p150
        %s259 = sand.u32 %s140, 1
        %s260 = scalar_lea.sflag [#allocation4], %s259
        %s261 = sand.u32 %s140, 1
        %s262 = smul.addr %s261, 256
        %s263 = scalar_lea.vmem [#allocation5], %s262
        %p264 = pneg %p179
        %p265 = pneg %p176
        %s266 = smul.u32 32, %s22
        %p267 = scmp.lt.s32.totalorder %s266, 63
        %s268 = scalar_select %p267, %s266, 63
        %s269 = smul.addr %s268, 8
        %s270 = scalar_lea.vmem %s6, %s269
        %s271 = smul.u32 32, %s22
        %p272 = scmp.lt.s32.totalorder %s271, 63
        %s273 = scalar_select %p272, %s271, 63
        %s274 = smul.addr %s273, 8
        %s275 = scalar_lea.vmem %s0, %s274
        %s276 = smul.u32 32, %s22
        %s277 = smul.u32 32, %s22
        %s278 = smul.u32 32, %s22
        %p279 = scmp.lt.s32.totalorder %s278, 63
        %s280 = scalar_select %p279, %s278, 63
        %s281 = smul.addr %s280, 8
        %s282 = scalar_lea.vmem %s6, %s281
        %s283 = smul.u32 32, %s22
        %v284 = vld [vmem:[%s275] sm:$0xff]
        %v285 = vld [vmem:[%s275 + $0x8] sm:$0xff]
        %v286 = vld [vmem:[%s275 + $0x10] sm:$0xff]
        %v287 = vld [vmem:[%s275 + $0x18] sm:$0xff]
        %v288 = vld [vmem:[%s275 + $0x20] sm:$0xff]
        %v289 = vld [vmem:[%s275 + $0x28] sm:$0xff]
        %v290 = vld [vmem:[%s275 + $0x30] sm:$0xff]
        %v291 = vld [vmem:[%s275 + $0x38] sm:$0xff]
        %v292 = vld [vmem:[%s275 + $0x40] sm:$0xff]
        %v293 = vld [vmem:[%s275 + $0x48] sm:$0xff]
        %v294 = vld [vmem:[%s275 + $0x50] sm:$0xff]
        %v295 = vld [vmem:[%s275 + $0x58] sm:$0xff]
        %v296 = vld [vmem:[%s275 + $0x60] sm:$0xff]
        %v297 = vld [vmem:[%s275 + $0x68] sm:$0xff]
        %v298 = vld [vmem:[%s275 + $0x70] sm:$0xff]
        %v299 = vld [vmem:[%s275 + $0x78] sm:$0xff]
        %v300 = vld [vmem:[%s275 + $0x80] sm:$0xff]
        %v301 = vld [vmem:[%s275 + $0x88] sm:$0xff]
        %v302 = vld [vmem:[%s275 + $0x90] sm:$0xff]
        %v303 = vld [vmem:[%s275 + $0x98] sm:$0xff]
        %v304 = vld [vmem:[%s275 + $0xa0] sm:$0xff]
        %v305 = vld [vmem:[%s275 + $0xa8] sm:$0xff]
        %v306 = vld [vmem:[%s275 + $0xb0] sm:$0xff]
        %v307 = vld [vmem:[%s275 + $0xb8] sm:$0xff]
        %v308 = vld [vmem:[%s275 + $0xc0] sm:$0xff]
        %v309 = vld [vmem:[%s275 + $0xc8] sm:$0xff]
        %v310 = vld [vmem:[%s275 + $0xd0] sm:$0xff]
        %v311 = vld [vmem:[%s275 + $0xd8] sm:$0xff]
        %v312 = vld [vmem:[%s275 + $0xe0] sm:$0xff]
        %v313 = vld [vmem:[%s275 + $0xe8] sm:$0xff]
        %v314 = vld [vmem:[%s275 + $0xf0] sm:$0xff]
        %v315 = vld [vmem:[%s275 + $0xf8] sm:$0xff]
        %v316 = vld [vmem:[%s1] sm:$0xff]
        %v317 = vld [vmem:[%s1 + $0x8] sm:$0xff]
        %v318 = vld [vmem:[%s1 + $0x10] sm:$0xff]
        %v319 = vld [vmem:[%s1 + $0x18] sm:$0xff]
        %v320 = vld [vmem:[%s1 + $0x20] sm:$0xff]
        %v321 = vld [vmem:[%s1 + $0x28] sm:$0xff]
        %v322 = vld [vmem:[%s1 + $0x30] sm:$0xff]
        %v323 = vld [vmem:[%s1 + $0x38] sm:$0xff]
        %v324 = vld [vmem:[%s1 + $0x40] sm:$0xff]
        %v325 = vld [vmem:[%s1 + $0x48] sm:$0xff]
        %v326 = vld [vmem:[%s1 + $0x50] sm:$0xff]
        %v327 = vld [vmem:[%s1 + $0x58] sm:$0xff]
        %v328 = vld [vmem:[%s1 + $0x60] sm:$0xff]
        %v329 = vld [vmem:[%s1 + $0x68] sm:$0xff]
        %v330 = vld [vmem:[%s1 + $0x70] sm:$0xff]
        %v331 = vld [vmem:[%s1 + $0x78] sm:$0xff]
        %v332 = vld [vmem:[%s1 + $0x80] sm:$0xff]
        %v333 = vld [vmem:[%s1 + $0x88] sm:$0xff]
        %v334 = vld [vmem:[%s1 + $0x90] sm:$0xff]
        %v335 = vld [vmem:[%s1 + $0x98] sm:$0xff]
        %v336 = vld [vmem:[%s1 + $0xa0] sm:$0xff]
        %v337 = vld [vmem:[%s1 + $0xa8] sm:$0xff]
        %v338 = vld [vmem:[%s1 + $0xb0] sm:$0xff]
        %v339 = vld [vmem:[%s1 + $0xb8] sm:$0xff]
        %v340 = vld [vmem:[%s1 + $0xc0] sm:$0xff]
        %v341 = vld [vmem:[%s1 + $0xc8] sm:$0xff]
        %v342 = vld [vmem:[%s1 + $0xd0] sm:$0xff]
        %v343 = vld [vmem:[%s1 + $0xd8] sm:$0xff]
        %v344 = vld [vmem:[%s1 + $0xe0] sm:$0xff]
        %v345 = vld [vmem:[%s1 + $0xe8] sm:$0xff]
        %v346 = vld [vmem:[%s1 + $0xf0] sm:$0xff]
        %v347 = vld [vmem:[%s1 + $0xf8] sm:$0xff]
        %v348 = vld [vmem:[%s1 + $0x100] sm:$0xff]
        %v349 = vld [vmem:[%s1 + $0x108] sm:$0xff]
        %v350 = vld [vmem:[%s1 + $0x110] sm:$0xff]
        %v351 = vld [vmem:[%s1 + $0x118] sm:$0xff]
        %v352 = vld [vmem:[%s1 + $0x120] sm:$0xff]
        %v353 = vld [vmem:[%s1 + $0x128] sm:$0xff]
        %v354 = vld [vmem:[%s1 + $0x130] sm:$0xff]
        %v355 = vld [vmem:[%s1 + $0x138] sm:$0xff]
        %v356 = vld [vmem:[%s1 + $0x140] sm:$0xff]
        %v357 = vld [vmem:[%s1 + $0x148] sm:$0xff]
        %v358 = vld [vmem:[%s1 + $0x150] sm:$0xff]
        %v359 = vld [vmem:[%s1 + $0x158] sm:$0xff]
        %v360 = vld [vmem:[%s1 + $0x160] sm:$0xff]
        %v361 = vld [vmem:[%s1 + $0x168] sm:$0xff]
        %v362 = vld [vmem:[%s1 + $0x170] sm:$0xff]
        %v363 = vld [vmem:[%s1 + $0x178] sm:$0xff]
        %v364 = vld [vmem:[%s2] sm:$0x7]
        %v366 = vperm.slane %v364, 0
        %v367 = vperm.slane %v364, 1
        %v368 = vperm.slane %v364, 2
        %372 = vmatpush.msra.mxu0 %v361
        %373 = vmatpush.msra.mxu0 %v358
        %374 = vmatpush.msra.mxu0 %v355
        %375 = vmatpush.msra.mxu0 %v352
        %376 = vmatpush.msra.mxu0 %v349
        %377 = vmatpush.msra.mxu0 %v346
        %378 = vmatpush.msra.mxu0 %v343
        %379 = vmatpush.msra.mxu0 %v340
        %380 = vmatpush.msra.mxu0 %v337
        %381 = vmatpush.msra.mxu0 %v334
        %382 = vmatpush.msra.mxu0 %v331
        %383 = vmatpush.msra.mxu0 %v328
        %384 = vmatpush.msra.mxu0 %v325
        %385 = vmatpush.msra.mxu0 %v322
        %386 = vmatpush.msra.mxu0 %v319
        %387 = vmatpush.msra.mxu0 %v316
        %388 = vmatmul.f32.gmra.mxu0 %v284
        %v389 = vpop.f32.mrf.mxu0
        %v390 = vadd.f32 %v366, %v389
        %391 = vmatmul.f32.gmra.mxu0 %v285
        %v392 = vpop.f32.mrf.mxu0
        %v393 = vadd.f32 %v366, %v392
        %394 = vmatmul.f32.gmra.mxu0 %v286
        %v395 = vpop.f32.mrf.mxu0
        %v396 = vadd.f32 %v366, %v395
        %397 = vmatmul.f32.gmra.mxu0 %v287
        %v398 = vpop.f32.mrf.mxu0
        %v399 = vadd.f32 %v366, %v398
        %400 = vmatmul.f32.gmra.mxu0 %v288
        %v401 = vpop.f32.mrf.mxu0
        %v402 = vadd.f32 %v366, %v401
        %403 = vmatmul.f32.gmra.mxu0 %v289
        %v404 = vpop.f32.mrf.mxu0
        %v405 = vadd.f32 %v366, %v404
        %406 = vmatmul.f32.gmra.mxu0 %v290
        %v407 = vpop.f32.mrf.mxu0
        %v408 = vadd.f32 %v366, %v407
        %409 = vmatmul.f32.gmra.mxu0 %v291
        %v410 = vpop.f32.mrf.mxu0
        %v411 = vadd.f32 %v366, %v410
        %412 = vmatmul.f32.gmra.mxu0 %v292
        %v413 = vpop.f32.mrf.mxu0
        %v414 = vadd.f32 %v366, %v413
        %415 = vmatmul.f32.gmra.mxu0 %v293
        %v416 = vpop.f32.mrf.mxu0
        %v417 = vadd.f32 %v366, %v416
        %418 = vmatmul.f32.gmra.mxu0 %v294
        %v419 = vpop.f32.mrf.mxu0
        %v420 = vadd.f32 %v366, %v419
        %421 = vmatmul.f32.gmra.mxu0 %v295
        %v422 = vpop.f32.mrf.mxu0
        %v423 = vadd.f32 %v366, %v422
        %424 = vmatmul.f32.gmra.mxu0 %v296
        %v425 = vpop.f32.mrf.mxu0
        %v426 = vadd.f32 %v366, %v425
        %427 = vmatmul.f32.gmra.mxu0 %v297
        %v428 = vpop.f32.mrf.mxu0
        %v429 = vadd.f32 %v366, %v428
        %430 = vmatmul.f32.gmra.mxu0 %v298
        %v431 = vpop.f32.mrf.mxu0
        %v432 = vadd.f32 %v366, %v431
        %433 = vmatmul.f32.gmra.mxu0 %v299
        %v434 = vpop.f32.mrf.mxu0
        %v435 = vadd.f32 %v366, %v434
        %436 = vmatmul.f32.gmra.mxu0 %v300
        %v437 = vpop.f32.mrf.mxu0
        %v438 = vadd.f32 %v366, %v437
        %439 = vmatmul.f32.gmra.mxu0 %v301
        %v440 = vpop.f32.mrf.mxu0
        %v441 = vadd.f32 %v366, %v440
        %442 = vmatmul.f32.gmra.mxu0 %v302
        %v443 = vpop.f32.mrf.mxu0
        %v444 = vadd.f32 %v366, %v443
        %445 = vmatmul.f32.gmra.mxu0 %v303
        %v446 = vpop.f32.mrf.mxu0
        %v447 = vadd.f32 %v366, %v446
        %448 = vmatmul.f32.gmra.mxu0 %v304
        %v449 = vpop.f32.mrf.mxu0
        %v450 = vadd.f32 %v366, %v449
        %451 = vmatmul.f32.gmra.mxu0 %v305
        %v452 = vpop.f32.mrf.mxu0
        %v453 = vadd.f32 %v366, %v452
        %454 = vmatmul.f32.gmra.mxu0 %v306
        %v455 = vpop.f32.mrf.mxu0
        %v456 = vadd.f32 %v366, %v455
        %457 = vmatmul.f32.gmra.mxu0 %v307
        %v458 = vpop.f32.mrf.mxu0
        %v459 = vadd.f32 %v366, %v458
        %460 = vmatmul.f32.gmra.mxu0 %v308
        %v461 = vpop.f32.mrf.mxu0
        %v462 = vadd.f32 %v366, %v461
        %463 = vmatmul.f32.gmra.mxu0 %v309
        %v464 = vpop.f32.mrf.mxu0
        %v465 = vadd.f32 %v366, %v464
        %466 = vmatmul.f32.gmra.mxu0 %v310
        %v467 = vpop.f32.mrf.mxu0
        %v468 = vadd.f32 %v366, %v467
        %469 = vmatmul.f32.gmra.mxu0 %v311
        %v470 = vpop.f32.mrf.mxu0
        %v471 = vadd.f32 %v366, %v470
        %472 = vmatmul.f32.gmra.mxu0 %v312
        %v473 = vpop.f32.mrf.mxu0
        %v474 = vadd.f32 %v366, %v473
        %475 = vmatmul.f32.gmra.mxu0 %v313
        %v476 = vpop.f32.mrf.mxu0
        %v477 = vadd.f32 %v366, %v476
        %478 = vmatmul.f32.gmra.mxu0 %v314
        %v479 = vpop.f32.mrf.mxu0
        %v480 = vadd.f32 %v366, %v479
        %481 = vmatmul.f32.gmra.mxu0 %v315
        %v482 = vpop.f32.mrf.mxu0
        %v483 = vadd.f32 %v366, %v482
        %484 = vdwg.mxu0
        %485 = vmatpush.msra.mxu0 %v362
        %486 = vmatpush.msra.mxu0 %v359
        %487 = vmatpush.msra.mxu0 %v356
        %488 = vmatpush.msra.mxu0 %v353
        %489 = vmatpush.msra.mxu0 %v350
        %490 = vmatpush.msra.mxu0 %v347
        %491 = vmatpush.msra.mxu0 %v344
        %492 = vmatpush.msra.mxu0 %v341
        %493 = vmatpush.msra.mxu0 %v338
        %494 = vmatpush.msra.mxu0 %v335
        %495 = vmatpush.msra.mxu0 %v332
        %496 = vmatpush.msra.mxu0 %v329
        %497 = vmatpush.msra.mxu0 %v326
        %498 = vmatpush.msra.mxu0 %v323
        %499 = vmatpush.msra.mxu0 %v320
        %500 = vmatpush.msra.mxu0 %v317
        %501 = vmatmul.f32.gmra.mxu0 %v284
        %v502 = vpop.f32.mrf.mxu0
        %v503 = vadd.f32 %v367, %v502
        %504 = vmatmul.f32.gmra.mxu0 %v285
        %v505 = vpop.f32.mrf.mxu0
        %v506 = vadd.f32 %v367, %v505
        %507 = vmatmul.f32.gmra.mxu0 %v286
        %v508 = vpop.f32.mrf.mxu0
        %v509 = vadd.f32 %v367, %v508
        %510 = vmatmul.f32.gmra.mxu0 %v287
        %v511 = vpop.f32.mrf.mxu0
        %v512 = vadd.f32 %v367, %v511
        %513 = vmatmul.f32.gmra.mxu0 %v288
        %v514 = vpop.f32.mrf.mxu0
        %v515 = vadd.f32 %v367, %v514
        %516 = vmatmul.f32.gmra.mxu0 %v289
        %v517 = vpop.f32.mrf.mxu0
        %v518 = vadd.f32 %v367, %v517
        %519 = vmatmul.f32.gmra.mxu0 %v290
        %v520 = vpop.f32.mrf.mxu0
        %v521 = vadd.f32 %v367, %v520
        %522 = vmatmul.f32.gmra.mxu0 %v291
        %v523 = vpop.f32.mrf.mxu0
        %v524 = vadd.f32 %v367, %v523
        %525 = vmatmul.f32.gmra.mxu0 %v292
        %v526 = vpop.f32.mrf.mxu0
        %v527 = vadd.f32 %v367, %v526
        %528 = vmatmul.f32.gmra.mxu0 %v293
        %v529 = vpop.f32.mrf.mxu0
        %v530 = vadd.f32 %v367, %v529
        %531 = vmatmul.f32.gmra.mxu0 %v294
        %v532 = vpop.f32.mrf.mxu0
        %v533 = vadd.f32 %v367, %v532
        %534 = vmatmul.f32.gmra.mxu0 %v295
        %v535 = vpop.f32.mrf.mxu0
        %v536 = vadd.f32 %v367, %v535
        %537 = vmatmul.f32.gmra.mxu0 %v296
        %v538 = vpop.f32.mrf.mxu0
        %v539 = vadd.f32 %v367, %v538
        %540 = vmatmul.f32.gmra.mxu0 %v297
        %v541 = vpop.f32.mrf.mxu0
        %v542 = vadd.f32 %v367, %v541
        %543 = vmatmul.f32.gmra.mxu0 %v298
        %v544 = vpop.f32.mrf.mxu0
        %v545 = vadd.f32 %v367, %v544
        %546 = vmatmul.f32.gmra.mxu0 %v299
        %v547 = vpop.f32.mrf.mxu0
        %v548 = vadd.f32 %v367, %v547
        %549 = vmatmul.f32.gmra.mxu0 %v300
        %v550 = vpop.f32.mrf.mxu0
        %v551 = vadd.f32 %v367, %v550
        %552 = vmatmul.f32.gmra.mxu0 %v301
        %v553 = vpop.f32.mrf.mxu0
        %v554 = vadd.f32 %v367, %v553
        %555 = vmatmul.f32.gmra.mxu0 %v302
        %v556 = vpop.f32.mrf.mxu0
        %v557 = vadd.f32 %v367, %v556
        %558 = vmatmul.f32.gmra.mxu0 %v303
        %v559 = vpop.f32.mrf.mxu0
        %v560 = vadd.f32 %v367, %v559
        %561 = vmatmul.f32.gmra.mxu0 %v304
        %v562 = vpop.f32.mrf.mxu0
        %v563 = vadd.f32 %v367, %v562
        %564 = vmatmul.f32.gmra.mxu0 %v305
        %v565 = vpop.f32.mrf.mxu0
        %v566 = vadd.f32 %v367, %v565
        %567 = vmatmul.f32.gmra.mxu0 %v306
        %v568 = vpop.f32.mrf.mxu0
        %v569 = vadd.f32 %v367, %v568
        %570 = vmatmul.f32.gmra.mxu0 %v307
        %v571 = vpop.f32.mrf.mxu0
        %v572 = vadd.f32 %v367, %v571
        %573 = vmatmul.f32.gmra.mxu0 %v308
        %v574 = vpop.f32.mrf.mxu0
        %v575 = vadd.f32 %v367, %v574
        %576 = vmatmul.f32.gmra.mxu0 %v309
        %v577 = vpop.f32.mrf.mxu0
        %v578 = vadd.f32 %v367, %v577
        %579 = vmatmul.f32.gmra.mxu0 %v310
        %v580 = vpop.f32.mrf.mxu0
        %v581 = vadd.f32 %v367, %v580
        %582 = vmatmul.f32.gmra.mxu0 %v311
        %v583 = vpop.f32.mrf.mxu0
        %v584 = vadd.f32 %v367, %v583
        %585 = vmatmul.f32.gmra.mxu0 %v312
        %v586 = vpop.f32.mrf.mxu0
        %v587 = vadd.f32 %v367, %v586
        %588 = vmatmul.f32.gmra.mxu0 %v313
        %v589 = vpop.f32.mrf.mxu0
        %v590 = vadd.f32 %v367, %v589
        %591 = vmatmul.f32.gmra.mxu0 %v314
        %v592 = vpop.f32.mrf.mxu0
        %v593 = vadd.f32 %v367, %v592
        %594 = vmatmul.f32.gmra.mxu0 %v315
        %v595 = vpop.f32.mrf.mxu0
        %v596 = vadd.f32 %v367, %v595
        %597 = vdwg.mxu0
        %598 = vmatpush.msra.mxu0 %v363
        %599 = vmatpush.msra.mxu0 %v360
        %600 = vmatpush.msra.mxu0 %v357
        %601 = vmatpush.msra.mxu0 %v354
        %602 = vmatpush.msra.mxu0 %v351
        %603 = vmatpush.msra.mxu0 %v348
        %604 = vmatpush.msra.mxu0 %v345
        %605 = vmatpush.msra.mxu0 %v342
        %606 = vmatpush.msra.mxu0 %v339
        %607 = vmatpush.msra.mxu0 %v336
        %608 = vmatpush.msra.mxu0 %v333
        %609 = vmatpush.msra.mxu0 %v330
        %610 = vmatpush.msra.mxu0 %v327
        %611 = vmatpush.msra.mxu0 %v324
        %612 = vmatpush.msra.mxu0 %v321
        %613 = vmatpush.msra.mxu0 %v318
        %614 = vmatmul.f32.gmra.mxu0 %v284
        %v615 = vpop.f32.mrf.mxu0
        %v616 = vadd.f32 %v368, %v615
        %617 = vmatmul.f32.gmra.mxu0 %v285
        %v618 = vpop.f32.mrf.mxu0
        %v619 = vadd.f32 %v368, %v618
        %620 = vmatmul.f32.gmra.mxu0 %v286
        %v621 = vpop.f32.mrf.mxu0
        %v622 = vadd.f32 %v368, %v621
        %623 = vmatmul.f32.gmra.mxu0 %v287
        %v624 = vpop.f32.mrf.mxu0
        %v625 = vadd.f32 %v368, %v624
        %626 = vmatmul.f32.gmra.mxu0 %v288
        %v627 = vpop.f32.mrf.mxu0
        %v628 = vadd.f32 %v368, %v627
        %629 = vmatmul.f32.gmra.mxu0 %v289
        %v630 = vpop.f32.mrf.mxu0
        %v631 = vadd.f32 %v368, %v630
        %632 = vmatmul.f32.gmra.mxu0 %v290
        %v633 = vpop.f32.mrf.mxu0
        %v634 = vadd.f32 %v368, %v633
        %635 = vmatmul.f32.gmra.mxu0 %v291
        %v636 = vpop.f32.mrf.mxu0
        %v637 = vadd.f32 %v368, %v636
        %638 = vmatmul.f32.gmra.mxu0 %v292
        %v639 = vpop.f32.mrf.mxu0
        %v640 = vadd.f32 %v368, %v639
        %641 = vmatmul.f32.gmra.mxu0 %v293
        %v642 = vpop.f32.mrf.mxu0
        %v643 = vadd.f32 %v368, %v642
        %644 = vmatmul.f32.gmra.mxu0 %v294
        %v645 = vpop.f32.mrf.mxu0
        %v646 = vadd.f32 %v368, %v645
        %647 = vmatmul.f32.gmra.mxu0 %v295
        %v648 = vpop.f32.mrf.mxu0
        %v649 = vadd.f32 %v368, %v648
        %650 = vmatmul.f32.gmra.mxu0 %v296
        %v651 = vpop.f32.mrf.mxu0
        %v652 = vadd.f32 %v368, %v651
        %653 = vmatmul.f32.gmra.mxu0 %v297
        %v654 = vpop.f32.mrf.mxu0
        %v655 = vadd.f32 %v368, %v654
        %656 = vmatmul.f32.gmra.mxu0 %v298
        %v657 = vpop.f32.mrf.mxu0
        %v658 = vadd.f32 %v368, %v657
        %659 = vmatmul.f32.gmra.mxu0 %v299
        %v660 = vpop.f32.mrf.mxu0
        %v661 = vadd.f32 %v368, %v660
        %662 = vmatmul.f32.gmra.mxu0 %v300
        %v663 = vpop.f32.mrf.mxu0
        %v664 = vadd.f32 %v368, %v663
        %665 = vmatmul.f32.gmra.mxu0 %v301
        %v666 = vpop.f32.mrf.mxu0
        %v667 = vadd.f32 %v368, %v666
        %668 = vmatmul.f32.gmra.mxu0 %v302
        %v669 = vpop.f32.mrf.mxu0
        %v670 = vadd.f32 %v368, %v669
        %671 = vmatmul.f32.gmra.mxu0 %v303
        %v672 = vpop.f32.mrf.mxu0
        %v673 = vadd.f32 %v368, %v672
        %674 = vmatmul.f32.gmra.mxu0 %v304
        %v675 = vpop.f32.mrf.mxu0
        %v676 = vadd.f32 %v368, %v675
        %677 = vmatmul.f32.gmra.mxu0 %v305
        %v678 = vpop.f32.mrf.mxu0
        %v679 = vadd.f32 %v368, %v678
        %680 = vmatmul.f32.gmra.mxu0 %v306
        %v681 = vpop.f32.mrf.mxu0
        %v682 = vadd.f32 %v368, %v681
        %683 = vmatmul.f32.gmra.mxu0 %v307
        %v684 = vpop.f32.mrf.mxu0
        %v685 = vadd.f32 %v368, %v684
        %686 = vmatmul.f32.gmra.mxu0 %v308
        %v687 = vpop.f32.mrf.mxu0
        %v688 = vadd.f32 %v368, %v687
        %689 = vmatmul.f32.gmra.mxu0 %v309
        %v690 = vpop.f32.mrf.mxu0
        %v691 = vadd.f32 %v368, %v690
        %692 = vmatmul.f32.gmra.mxu0 %v310
        %v693 = vpop.f32.mrf.mxu0
        %v694 = vadd.f32 %v368, %v693
        %695 = vmatmul.f32.gmra.mxu0 %v311
        %v696 = vpop.f32.mrf.mxu0
        %v697 = vadd.f32 %v368, %v696
        %698 = vmatmul.f32.gmra.mxu0 %v312
        %v699 = vpop.f32.mrf.mxu0
        %v700 = vadd.f32 %v368, %v699
        %701 = vmatmul.f32.gmra.mxu0 %v313
        %v702 = vpop.f32.mrf.mxu0
        %v703 = vadd.f32 %v368, %v702
        %704 = vmatmul.f32.gmra.mxu0 %v314
        %v705 = vpop.f32.mrf.mxu0
        %v706 = vadd.f32 %v368, %v705
        %707 = vmatmul.f32.gmra.mxu0 %v315
        %v708 = vpop.f32.mrf.mxu0
        %v709 = vadd.f32 %v368, %v708
        %710 = vdwg.mxu0
        %v711 = vlaneseq
        %v712 = vand.u32 %v711, 127
        %vm713 = vcmask 64512
        %v714 = vsel %vm713, %v616, -inf
        %715 = vmax.xlane.f32.xlu0 %v714
        %v716 = vpop.xlane.xlu0 %715
        %v717 = vsel %vm713, %v619, -inf
        %718 = vmax.xlane.f32.xlu0 %v717
        %v719 = vpop.xlane.xlu0 %718
        %v720 = vsel %vm713, %v622, -inf
        %721 = vmax.xlane.f32.xlu0 %v720
        %v722 = vpop.xlane.xlu0 %721
        %v723 = vsel %vm713, %v625, -inf
        %724 = vmax.xlane.f32.xlu0 %v723
        %v725 = vpop.xlane.xlu0 %724
        %v726 = vsel %vm713, %v628, -inf
        %727 = vmax.xlane.f32.xlu0 %v726
        %v728 = vpop.xlane.xlu0 %727
        %v729 = vsel %vm713, %v631, -inf
        %730 = vmax.xlane.f32.xlu0 %v729
        %v731 = vpop.xlane.xlu0 %730
        %v732 = vsel %vm713, %v634, -inf
        %733 = vmax.xlane.f32.xlu0 %v732
        %v734 = vpop.xlane.xlu0 %733
        %v735 = vsel %vm713, %v637, -inf
        %736 = vmax.xlane.f32.xlu0 %v735
        %v737 = vpop.xlane.xlu0 %736
        %v738 = vsel %vm713, %v640, -inf
        %739 = vmax.xlane.f32.xlu0 %v738
        %v740 = vpop.xlane.xlu0 %739
        %v741 = vsel %vm713, %v643, -inf
        %742 = vmax.xlane.f32.xlu0 %v741
        %v743 = vpop.xlane.xlu0 %742
        %v744 = vsel %vm713, %v646, -inf
        %745 = vmax.xlane.f32.xlu0 %v744
        %v746 = vpop.xlane.xlu0 %745
        %v747 = vsel %vm713, %v649, -inf
        %748 = vmax.xlane.f32.xlu0 %v747
        %v749 = vpop.xlane.xlu0 %748
        %v750 = vsel %vm713, %v652, -inf
        %751 = vmax.xlane.f32.xlu0 %v750
        %v752 = vpop.xlane.xlu0 %751
        %v753 = vsel %vm713, %v655, -inf
        %754 = vmax.xlane.f32.xlu0 %v753
        %v755 = vpop.xlane.xlu0 %754
        %v756 = vsel %vm713, %v658, -inf
        %757 = vmax.xlane.f32.xlu0 %v756
        %v758 = vpop.xlane.xlu0 %757
        %v759 = vsel %vm713, %v661, -inf
        %760 = vmax.xlane.f32.xlu0 %v759
        %v761 = vpop.xlane.xlu0 %760
        %v762 = vsel %vm713, %v664, -inf
        %763 = vmax.xlane.f32.xlu0 %v762
        %v764 = vpop.xlane.xlu0 %763
        %v765 = vsel %vm713, %v667, -inf
        %766 = vmax.xlane.f32.xlu0 %v765
        %v767 = vpop.xlane.xlu0 %766
        %v768 = vsel %vm713, %v670, -inf
        %769 = vmax.xlane.f32.xlu0 %v768
        %v770 = vpop.xlane.xlu0 %769
        %v771 = vsel %vm713, %v673, -inf
        %772 = vmax.xlane.f32.xlu0 %v771
        %v773 = vpop.xlane.xlu0 %772
        %v774 = vsel %vm713, %v676, -inf
        %775 = vmax.xlane.f32.xlu0 %v774
        %v776 = vpop.xlane.xlu0 %775
        %v777 = vsel %vm713, %v679, -inf
        %778 = vmax.xlane.f32.xlu0 %v777
        %v779 = vpop.xlane.xlu0 %778
        %v780 = vsel %vm713, %v682, -inf
        %781 = vmax.xlane.f32.xlu0 %v780
        %v782 = vpop.xlane.xlu0 %781
        %v783 = vsel %vm713, %v685, -inf
        %784 = vmax.xlane.f32.xlu0 %v783
        %v785 = vpop.xlane.xlu0 %784
        %v786 = vsel %vm713, %v688, -inf
        %787 = vmax.xlane.f32.xlu0 %v786
        %v788 = vpop.xlane.xlu0 %787
        %v789 = vsel %vm713, %v691, -inf
        %790 = vmax.xlane.f32.xlu0 %v789
        %v791 = vpop.xlane.xlu0 %790
        %v792 = vsel %vm713, %v694, -inf
        %793 = vmax.xlane.f32.xlu0 %v792
        %v794 = vpop.xlane.xlu0 %793
        %v795 = vsel %vm713, %v697, -inf
        %796 = vmax.xlane.f32.xlu0 %v795
        %v797 = vpop.xlane.xlu0 %796
        %v798 = vsel %vm713, %v700, -inf
        %799 = vmax.xlane.f32.xlu0 %v798
        %v800 = vpop.xlane.xlu0 %799
        %v801 = vsel %vm713, %v703, -inf
        %802 = vmax.xlane.f32.xlu0 %v801
        %v803 = vpop.xlane.xlu0 %802
        %v804 = vsel %vm713, %v706, -inf
        %805 = vmax.xlane.f32.xlu0 %v804
        %v806 = vpop.xlane.xlu0 %805
        %v807 = vsel %vm713, %v709, -inf
        %808 = vmax.xlane.f32.xlu0 %v807
        %v809 = vpop.xlane.xlu0 %808
        %vm810 = vcmp.eq.f32.partialorder %v616, %v716
        %vm811 = vcmp.eq.f32.partialorder %v619, %v719
        %vm812 = vcmp.eq.f32.partialorder %v622, %v722
        %vm813 = vcmp.eq.f32.partialorder %v625, %v725
        %vm814 = vcmp.eq.f32.partialorder %v628, %v728
        %vm815 = vcmp.eq.f32.partialorder %v631, %v731
        %vm816 = vcmp.eq.f32.partialorder %v634, %v734
        %vm817 = vcmp.eq.f32.partialorder %v637, %v737
        %vm818 = vcmp.eq.f32.partialorder %v640, %v740
        %vm819 = vcmp.eq.f32.partialorder %v643, %v743
        %vm820 = vcmp.eq.f32.partialorder %v646, %v746
        %vm821 = vcmp.eq.f32.partialorder %v649, %v749
        %vm822 = vcmp.eq.f32.partialorder %v652, %v752
        %vm823 = vcmp.eq.f32.partialorder %v655, %v755
        %vm824 = vcmp.eq.f32.partialorder %v658, %v758
        %vm825 = vcmp.eq.f32.partialorder %v661, %v761
        %vm826 = vcmp.eq.f32.partialorder %v664, %v764
        %vm827 = vcmp.eq.f32.partialorder %v667, %v767
        %vm828 = vcmp.eq.f32.partialorder %v670, %v770
        %vm829 = vcmp.eq.f32.partialorder %v673, %v773
        %vm830 = vcmp.eq.f32.partialorder %v676, %v776
        %vm831 = vcmp.eq.f32.partialorder %v679, %v779
        %vm832 = vcmp.eq.f32.partialorder %v682, %v782
        %vm833 = vcmp.eq.f32.partialorder %v685, %v785
        %vm834 = vcmp.eq.f32.partialorder %v688, %v788
        %vm835 = vcmp.eq.f32.partialorder %v691, %v791
        %vm836 = vcmp.eq.f32.partialorder %v694, %v794
        %vm837 = vcmp.eq.f32.partialorder %v697, %v797
        %vm838 = vcmp.eq.f32.partialorder %v700, %v800
        %vm839 = vcmp.eq.f32.partialorder %v703, %v803
        %vm840 = vcmp.eq.f32.partialorder %v706, %v806
        %vm841 = vcmp.eq.f32.partialorder %v709, %v809
        %v842 = vsel %vm810, %v712, 8
        %v843 = vsel %vm811, %v712, 8
        %v844 = vsel %vm812, %v712, 8
        %v845 = vsel %vm813, %v712, 8
        %v846 = vsel %vm814, %v712, 8
        %v847 = vsel %vm815, %v712, 8
        %v848 = vsel %vm816, %v712, 8
        %v849 = vsel %vm817, %v712, 8
        %v850 = vsel %vm818, %v712, 8
        %v851 = vsel %vm819, %v712, 8
        %v852 = vsel %vm820, %v712, 8
        %v853 = vsel %vm821, %v712, 8
        %v854 = vsel %vm822, %v712, 8
        %v855 = vsel %vm823, %v712, 8
        %v856 = vsel %vm824, %v712, 8
        %v857 = vsel %vm825, %v712, 8
        %v858 = vsel %vm826, %v712, 8
        %v859 = vsel %vm827, %v712, 8
        %v860 = vsel %vm828, %v712, 8
        %v861 = vsel %vm829, %v712, 8
        %v862 = vsel %vm830, %v712, 8
        %v863 = vsel %vm831, %v712, 8
        %v864 = vsel %vm832, %v712, 8
        %v865 = vsel %vm833, %v712, 8
        %v866 = vsel %vm834, %v712, 8
        %v867 = vsel %vm835, %v712, 8
        %v868 = vsel %vm836, %v712, 8
        %v869 = vsel %vm837, %v712, 8
        %v870 = vsel %vm838, %v712, 8
        %v871 = vsel %vm839, %v712, 8
        %v872 = vsel %vm840, %v712, 8
        %v873 = vsel %vm841, %v712, 8
        %v874 = vsel %vm713, %v842, 2147483647
        %v875 = vand.u32 %v874, 65535
        %v876 = vshra.s32 %v874, 16
        %v877 = vcvt.s32.f32 %v875
        %v878 = vcvt.s32.f32 %v876
        %879 = vmin.xlane.f32.xlu0 %v878
        %v880 = vpop.xlane.xlu0 %879
        %vm881 = vcmp.eq.f32.partialorder %v878, %v880
        %v882 = vsel %vm881, %v877, inf
        %883 = vmin.xlane.f32.xlu0 %v882
        %v884 = vpop.xlane.xlu0 %883
        %v885 = vcvt.f32.s32 %v884
        %v886 = vcvt.f32.s32 %v880
        %v887 = vshll.u32 %v886, 16
        %v888 = vadd.s32 %v887, %v885
        %v889 = vsel %vm713, %v843, 2147483647
        %v890 = vand.u32 %v889, 65535
        %v891 = vshra.s32 %v889, 16
        %v892 = vcvt.s32.f32 %v890
        %v893 = vcvt.s32.f32 %v891
        %894 = vmin.xlane.f32.xlu0 %v893
        %v895 = vpop.xlane.xlu0 %894
        %vm896 = vcmp.eq.f32.partialorder %v893, %v895
        %v897 = vsel %vm896, %v892, inf
        %898 = vmin.xlane.f32.xlu0 %v897
        %v899 = vpop.xlane.xlu0 %898
        %v900 = vcvt.f32.s32 %v899
        %v901 = vcvt.f32.s32 %v895
        %v902 = vshll.u32 %v901, 16
        %v903 = vadd.s32 %v902, %v900
        %v904 = vsel %vm713, %v844, 2147483647
        %v905 = vand.u32 %v904, 65535
        %v906 = vshra.s32 %v904, 16
        %v907 = vcvt.s32.f32 %v905
        %v908 = vcvt.s32.f32 %v906
        %909 = vmin.xlane.f32.xlu0 %v908
        %v910 = vpop.xlane.xlu0 %909
        %vm911 = vcmp.eq.f32.partialorder %v908, %v910
        %v912 = vsel %vm911, %v907, inf
        %913 = vmin.xlane.f32.xlu0 %v912
        %v914 = vpop.xlane.xlu0 %913
        %v915 = vcvt.f32.s32 %v914
        %v916 = vcvt.f32.s32 %v910
        %v917 = vshll.u32 %v916, 16
        %v918 = vadd.s32 %v917, %v915
        %v919 = vsel %vm713, %v845, 2147483647
        %v920 = vand.u32 %v919, 65535
        %v921 = vshra.s32 %v919, 16
        %v922 = vcvt.s32.f32 %v920
        %v923 = vcvt.s32.f32 %v921
        %924 = vmin.xlane.f32.xlu0 %v923
        %v925 = vpop.xlane.xlu0 %924
        %vm926 = vcmp.eq.f32.partialorder %v923, %v925
        %v927 = vsel %vm926, %v922, inf
        %928 = vmin.xlane.f32.xlu0 %v927
        %v929 = vpop.xlane.xlu0 %928
        %v930 = vcvt.f32.s32 %v929
        %v931 = vcvt.f32.s32 %v925
        %v932 = vshll.u32 %v931, 16
        %v933 = vadd.s32 %v932, %v930
        %v934 = vsel %vm713, %v846, 2147483647
        %v935 = vand.u32 %v934, 65535
        %v936 = vshra.s32 %v934, 16
        %v937 = vcvt.s32.f32 %v935
        %v938 = vcvt.s32.f32 %v936
        %939 = vmin.xlane.f32.xlu0 %v938
        %v940 = vpop.xlane.xlu0 %939
        %vm941 = vcmp.eq.f32.partialorder %v938, %v940
        %v942 = vsel %vm941, %v937, inf
        %943 = vmin.xlane.f32.xlu0 %v942
        %v944 = vpop.xlane.xlu0 %943
        %v945 = vcvt.f32.s32 %v944
        %v946 = vcvt.f32.s32 %v940
        %v947 = vshll.u32 %v946, 16
        %v948 = vadd.s32 %v947, %v945
        %v949 = vsel %vm713, %v847, 2147483647
        %v950 = vand.u32 %v949, 65535
        %v951 = vshra.s32 %v949, 16
        %v952 = vcvt.s32.f32 %v950
        %v953 = vcvt.s32.f32 %v951
        %954 = vmin.xlane.f32.xlu0 %v953
        %v955 = vpop.xlane.xlu0 %954
        %vm956 = vcmp.eq.f32.partialorder %v953, %v955
        %v957 = vsel %vm956, %v952, inf
        %958 = vmin.xlane.f32.xlu0 %v957
        %v959 = vpop.xlane.xlu0 %958
        %v960 = vcvt.f32.s32 %v959
        %v961 = vcvt.f32.s32 %v955
        %v962 = vshll.u32 %v961, 16
        %v963 = vadd.s32 %v962, %v960
        %v964 = vsel %vm713, %v848, 2147483647
        %v965 = vand.u32 %v964, 65535
        %v966 = vshra.s32 %v964, 16
        %v967 = vcvt.s32.f32 %v965
        %v968 = vcvt.s32.f32 %v966
        %969 = vmin.xlane.f32.xlu0 %v968
        %v970 = vpop.xlane.xlu0 %969
        %vm971 = vcmp.eq.f32.partialorder %v968, %v970
        %v972 = vsel %vm971, %v967, inf
        %973 = vmin.xlane.f32.xlu0 %v972
        %v974 = vpop.xlane.xlu0 %973
        %v975 = vcvt.f32.s32 %v974
        %v976 = vcvt.f32.s32 %v970
        %v977 = vshll.u32 %v976, 16
        %v978 = vadd.s32 %v977, %v975
        %v979 = vsel %vm713, %v849, 2147483647
        %v980 = vand.u32 %v979, 65535
        %v981 = vshra.s32 %v979, 16
        %v982 = vcvt.s32.f32 %v980
        %v983 = vcvt.s32.f32 %v981
        %984 = vmin.xlane.f32.xlu0 %v983
        %v985 = vpop.xlane.xlu0 %984
        %vm986 = vcmp.eq.f32.partialorder %v983, %v985
        %v987 = vsel %vm986, %v982, inf
        %988 = vmin.xlane.f32.xlu0 %v987
        %v989 = vpop.xlane.xlu0 %988
        %v990 = vcvt.f32.s32 %v989
        %v991 = vcvt.f32.s32 %v985
        %v992 = vshll.u32 %v991, 16
        %v993 = vadd.s32 %v992, %v990
        %v994 = vsel %vm713, %v850, 2147483647
        %v995 = vand.u32 %v994, 65535
        %v996 = vshra.s32 %v994, 16
        %v997 = vcvt.s32.f32 %v995
        %v998 = vcvt.s32.f32 %v996
        %999 = vmin.xlane.f32.xlu0 %v998
        %v1000 = vpop.xlane.xlu0 %999
        %vm1001 = vcmp.eq.f32.partialorder %v998, %v1000
        %v1002 = vsel %vm1001, %v997, inf
        %1003 = vmin.xlane.f32.xlu0 %v1002
        %v1004 = vpop.xlane.xlu0 %1003
        %v1005 = vcvt.f32.s32 %v1004
        %v1006 = vcvt.f32.s32 %v1000
        %v1007 = vshll.u32 %v1006, 16
        %v1008 = vadd.s32 %v1007, %v1005
        %v1009 = vsel %vm713, %v851, 2147483647
        %v1010 = vand.u32 %v1009, 65535
        %v1011 = vshra.s32 %v1009, 16
        %v1012 = vcvt.s32.f32 %v1010
        %v1013 = vcvt.s32.f32 %v1011
        %1014 = vmin.xlane.f32.xlu0 %v1013
        %v1015 = vpop.xlane.xlu0 %1014
        %vm1016 = vcmp.eq.f32.partialorder %v1013, %v1015
        %v1017 = vsel %vm1016, %v1012, inf
        %1018 = vmin.xlane.f32.xlu0 %v1017
        %v1019 = vpop.xlane.xlu0 %1018
        %v1020 = vcvt.f32.s32 %v1019
        %v1021 = vcvt.f32.s32 %v1015
        %v1022 = vshll.u32 %v1021, 16
        %v1023 = vadd.s32 %v1022, %v1020
        %v1024 = vsel %vm713, %v852, 2147483647
        %v1025 = vand.u32 %v1024, 65535
        %v1026 = vshra.s32 %v1024, 16
        %v1027 = vcvt.s32.f32 %v1025
        %v1028 = vcvt.s32.f32 %v1026
        %1029 = vmin.xlane.f32.xlu0 %v1028
        %v1030 = vpop.xlane.xlu0 %1029
        %vm1031 = vcmp.eq.f32.partialorder %v1028, %v1030
        %v1032 = vsel %vm1031, %v1027, inf
        %1033 = vmin.xlane.f32.xlu0 %v1032
        %v1034 = vpop.xlane.xlu0 %1033
        %v1035 = vcvt.f32.s32 %v1034
        %v1036 = vcvt.f32.s32 %v1030
        %v1037 = vshll.u32 %v1036, 16
        %v1038 = vadd.s32 %v1037, %v1035
        %v1039 = vsel %vm713, %v853, 2147483647
        %v1040 = vand.u32 %v1039, 65535
        %v1041 = vshra.s32 %v1039, 16
        %v1042 = vcvt.s32.f32 %v1040
        %v1043 = vcvt.s32.f32 %v1041
        %1044 = vmin.xlane.f32.xlu0 %v1043
        %v1045 = vpop.xlane.xlu0 %1044
        %vm1046 = vcmp.eq.f32.partialorder %v1043, %v1045
        %v1047 = vsel %vm1046, %v1042, inf
        %1048 = vmin.xlane.f32.xlu0 %v1047
        %v1049 = vpop.xlane.xlu0 %1048
        %v1050 = vcvt.f32.s32 %v1049
        %v1051 = vcvt.f32.s32 %v1045
        %v1052 = vshll.u32 %v1051, 16
        %v1053 = vadd.s32 %v1052, %v1050
        %v1054 = vsel %vm713, %v854, 2147483647
        %v1055 = vand.u32 %v1054, 65535
        %v1056 = vshra.s32 %v1054, 16
        %v1057 = vcvt.s32.f32 %v1055
        %v1058 = vcvt.s32.f32 %v1056
        %1059 = vmin.xlane.f32.xlu0 %v1058
        %v1060 = vpop.xlane.xlu0 %1059
        %vm1061 = vcmp.eq.f32.partialorder %v1058, %v1060
        %v1062 = vsel %vm1061, %v1057, inf
        %1063 = vmin.xlane.f32.xlu0 %v1062
        %v1064 = vpop.xlane.xlu0 %1063
        %v1065 = vcvt.f32.s32 %v1064
        %v1066 = vcvt.f32.s32 %v1060
        %v1067 = vshll.u32 %v1066, 16
        %v1068 = vadd.s32 %v1067, %v1065
        %v1069 = vsel %vm713, %v855, 2147483647
        %v1070 = vand.u32 %v1069, 65535
        %v1071 = vshra.s32 %v1069, 16
        %v1072 = vcvt.s32.f32 %v1070
        %v1073 = vcvt.s32.f32 %v1071
        %1074 = vmin.xlane.f32.xlu0 %v1073
        %v1075 = vpop.xlane.xlu0 %1074
        %vm1076 = vcmp.eq.f32.partialorder %v1073, %v1075
        %v1077 = vsel %vm1076, %v1072, inf
        %1078 = vmin.xlane.f32.xlu0 %v1077
        %v1079 = vpop.xlane.xlu0 %1078
        %v1080 = vcvt.f32.s32 %v1079
        %v1081 = vcvt.f32.s32 %v1075
        %v1082 = vshll.u32 %v1081, 16
        %v1083 = vadd.s32 %v1082, %v1080
        %v1084 = vsel %vm713, %v856, 2147483647
        %v1085 = vand.u32 %v1084, 65535
        %v1086 = vshra.s32 %v1084, 16
        %v1087 = vcvt.s32.f32 %v1085
        %v1088 = vcvt.s32.f32 %v1086
        %1089 = vmin.xlane.f32.xlu0 %v1088
        %v1090 = vpop.xlane.xlu0 %1089
        %vm1091 = vcmp.eq.f32.partialorder %v1088, %v1090
        %v1092 = vsel %vm1091, %v1087, inf
        %1093 = vmin.xlane.f32.xlu0 %v1092
        %v1094 = vpop.xlane.xlu0 %1093
        %v1095 = vcvt.f32.s32 %v1094
        %v1096 = vcvt.f32.s32 %v1090
        %v1097 = vshll.u32 %v1096, 16
        %v1098 = vadd.s32 %v1097, %v1095
        %v1099 = vsel %vm713, %v857, 2147483647
        %v1100 = vand.u32 %v1099, 65535
        %v1101 = vshra.s32 %v1099, 16
        %v1102 = vcvt.s32.f32 %v1100
        %v1103 = vcvt.s32.f32 %v1101
        %1104 = vmin.xlane.f32.xlu0 %v1103
        %v1105 = vpop.xlane.xlu0 %1104
        %vm1106 = vcmp.eq.f32.partialorder %v1103, %v1105
        %v1107 = vsel %vm1106, %v1102, inf
        %1108 = vmin.xlane.f32.xlu0 %v1107
        %v1109 = vpop.xlane.xlu0 %1108
        %v1110 = vcvt.f32.s32 %v1109
        %v1111 = vcvt.f32.s32 %v1105
        %v1112 = vshll.u32 %v1111, 16
        %v1113 = vadd.s32 %v1112, %v1110
        %v1114 = vsel %vm713, %v858, 2147483647
        %v1115 = vand.u32 %v1114, 65535
        %v1116 = vshra.s32 %v1114, 16
        %v1117 = vcvt.s32.f32 %v1115
        %v1118 = vcvt.s32.f32 %v1116
        %1119 = vmin.xlane.f32.xlu0 %v1118
        %v1120 = vpop.xlane.xlu0 %1119
        %vm1121 = vcmp.eq.f32.partialorder %v1118, %v1120
        %v1122 = vsel %vm1121, %v1117, inf
        %1123 = vmin.xlane.f32.xlu0 %v1122
        %v1124 = vpop.xlane.xlu0 %1123
        %v1125 = vcvt.f32.s32 %v1124
        %v1126 = vcvt.f32.s32 %v1120
        %v1127 = vshll.u32 %v1126, 16
        %v1128 = vadd.s32 %v1127, %v1125
        %v1129 = vsel %vm713, %v859, 2147483647
        %v1130 = vand.u32 %v1129, 65535
        %v1131 = vshra.s32 %v1129, 16
        %v1132 = vcvt.s32.f32 %v1130
        %v1133 = vcvt.s32.f32 %v1131
        %1134 = vmin.xlane.f32.xlu0 %v1133
        %v1135 = vpop.xlane.xlu0 %1134
        %vm1136 = vcmp.eq.f32.partialorder %v1133, %v1135
        %v1137 = vsel %vm1136, %v1132, inf
        %1138 = vmin.xlane.f32.xlu0 %v1137
        %v1139 = vpop.xlane.xlu0 %1138
        %v1140 = vcvt.f32.s32 %v1139
        %v1141 = vcvt.f32.s32 %v1135
        %v1142 = vshll.u32 %v1141, 16
        %v1143 = vadd.s32 %v1142, %v1140
        %v1144 = vsel %vm713, %v860, 2147483647
        %v1145 = vand.u32 %v1144, 65535
        %v1146 = vshra.s32 %v1144, 16
        %v1147 = vcvt.s32.f32 %v1145
        %v1148 = vcvt.s32.f32 %v1146
        %1149 = vmin.xlane.f32.xlu0 %v1148
        %v1150 = vpop.xlane.xlu0 %1149
        %vm1151 = vcmp.eq.f32.partialorder %v1148, %v1150
        %v1152 = vsel %vm1151, %v1147, inf
        %1153 = vmin.xlane.f32.xlu0 %v1152
        %v1154 = vpop.xlane.xlu0 %1153
        %v1155 = vcvt.f32.s32 %v1154
        %v1156 = vcvt.f32.s32 %v1150
        %v1157 = vshll.u32 %v1156, 16
        %v1158 = vadd.s32 %v1157, %v1155
        %v1159 = vsel %vm713, %v861, 2147483647
        %v1160 = vand.u32 %v1159, 65535
        %v1161 = vshra.s32 %v1159, 16
        %v1162 = vcvt.s32.f32 %v1160
        %v1163 = vcvt.s32.f32 %v1161
        %1164 = vmin.xlane.f32.xlu0 %v1163
        %v1165 = vpop.xlane.xlu0 %1164
        %vm1166 = vcmp.eq.f32.partialorder %v1163, %v1165
        %v1167 = vsel %vm1166, %v1162, inf
        %1168 = vmin.xlane.f32.xlu0 %v1167
        %v1169 = vpop.xlane.xlu0 %1168
        %v1170 = vcvt.f32.s32 %v1169
        %v1171 = vcvt.f32.s32 %v1165
        %v1172 = vshll.u32 %v1171, 16
        %v1173 = vadd.s32 %v1172, %v1170
        %v1174 = vsel %vm713, %v862, 2147483647
        %v1175 = vand.u32 %v1174, 65535
        %v1176 = vshra.s32 %v1174, 16
        %v1177 = vcvt.s32.f32 %v1175
        %v1178 = vcvt.s32.f32 %v1176
        %1179 = vmin.xlane.f32.xlu0 %v1178
        %v1180 = vpop.xlane.xlu0 %1179
        %vm1181 = vcmp.eq.f32.partialorder %v1178, %v1180
        %v1182 = vsel %vm1181, %v1177, inf
        %1183 = vmin.xlane.f32.xlu0 %v1182
        %v1184 = vpop.xlane.xlu0 %1183
        %v1185 = vcvt.f32.s32 %v1184
        %v1186 = vcvt.f32.s32 %v1180
        %v1187 = vshll.u32 %v1186, 16
        %v1188 = vadd.s32 %v1187, %v1185
        %v1189 = vsel %vm713, %v863, 2147483647
        %v1190 = vand.u32 %v1189, 65535
        %v1191 = vshra.s32 %v1189, 16
        %v1192 = vcvt.s32.f32 %v1190
        %v1193 = vcvt.s32.f32 %v1191
        %1194 = vmin.xlane.f32.xlu0 %v1193
        %v1195 = vpop.xlane.xlu0 %1194
        %vm1196 = vcmp.eq.f32.partialorder %v1193, %v1195
        %v1197 = vsel %vm1196, %v1192, inf
        %1198 = vmin.xlane.f32.xlu0 %v1197
        %v1199 = vpop.xlane.xlu0 %1198
        %v1200 = vcvt.f32.s32 %v1199
        %v1201 = vcvt.f32.s32 %v1195
        %v1202 = vshll.u32 %v1201, 16
        %v1203 = vadd.s32 %v1202, %v1200
        %v1204 = vsel %vm713, %v864, 2147483647
        %v1205 = vand.u32 %v1204, 65535
        %v1206 = vshra.s32 %v1204, 16
        %v1207 = vcvt.s32.f32 %v1205
        %v1208 = vcvt.s32.f32 %v1206
        %1209 = vmin.xlane.f32.xlu0 %v1208
        %v1210 = vpop.xlane.xlu0 %1209
        %vm1211 = vcmp.eq.f32.partialorder %v1208, %v1210
        %v1212 = vsel %vm1211, %v1207, inf
        %1213 = vmin.xlane.f32.xlu0 %v1212
        %v1214 = vpop.xlane.xlu0 %1213
        %v1215 = vcvt.f32.s32 %v1214
        %v1216 = vcvt.f32.s32 %v1210
        %v1217 = vshll.u32 %v1216, 16
        %v1218 = vadd.s32 %v1217, %v1215
        %v1219 = vsel %vm713, %v865, 2147483647
        %v1220 = vand.u32 %v1219, 65535
        %v1221 = vshra.s32 %v1219, 16
        %v1222 = vcvt.s32.f32 %v1220
        %v1223 = vcvt.s32.f32 %v1221
        %1224 = vmin.xlane.f32.xlu0 %v1223
        %v1225 = vpop.xlane.xlu0 %1224
        %vm1226 = vcmp.eq.f32.partialorder %v1223, %v1225
        %v1227 = vsel %vm1226, %v1222, inf
        %1228 = vmin.xlane.f32.xlu0 %v1227
        %v1229 = vpop.xlane.xlu0 %1228
        %v1230 = vcvt.f32.s32 %v1229
        %v1231 = vcvt.f32.s32 %v1225
        %v1232 = vshll.u32 %v1231, 16
        %v1233 = vadd.s32 %v1232, %v1230
        %v1234 = vsel %vm713, %v866, 2147483647
        %v1235 = vand.u32 %v1234, 65535
        %v1236 = vshra.s32 %v1234, 16
        %v1237 = vcvt.s32.f32 %v1235
        %v1238 = vcvt.s32.f32 %v1236
        %1239 = vmin.xlane.f32.xlu0 %v1238
        %v1240 = vpop.xlane.xlu0 %1239
        %vm1241 = vcmp.eq.f32.partialorder %v1238, %v1240
        %v1242 = vsel %vm1241, %v1237, inf
        %1243 = vmin.xlane.f32.xlu0 %v1242
        %v1244 = vpop.xlane.xlu0 %1243
        %v1245 = vcvt.f32.s32 %v1244
        %v1246 = vcvt.f32.s32 %v1240
        %v1247 = vshll.u32 %v1246, 16
        %v1248 = vadd.s32 %v1247, %v1245
        %v1249 = vsel %vm713, %v867, 2147483647
        %v1250 = vand.u32 %v1249, 65535
        %v1251 = vshra.s32 %v1249, 16
        %v1252 = vcvt.s32.f32 %v1250
        %v1253 = vcvt.s32.f32 %v1251
        %1254 = vmin.xlane.f32.xlu0 %v1253
        %v1255 = vpop.xlane.xlu0 %1254
        %vm1256 = vcmp.eq.f32.partialorder %v1253, %v1255
        %v1257 = vsel %vm1256, %v1252, inf
        %1258 = vmin.xlane.f32.xlu0 %v1257
        %v1259 = vpop.xlane.xlu0 %1258
        %v1260 = vcvt.f32.s32 %v1259
        %v1261 = vcvt.f32.s32 %v1255
        %v1262 = vshll.u32 %v1261, 16
        %v1263 = vadd.s32 %v1262, %v1260
        %v1264 = vsel %vm713, %v868, 2147483647
        %v1265 = vand.u32 %v1264, 65535
        %v1266 = vshra.s32 %v1264, 16
        %v1267 = vcvt.s32.f32 %v1265
        %v1268 = vcvt.s32.f32 %v1266
        %1269 = vmin.xlane.f32.xlu0 %v1268
        %v1270 = vpop.xlane.xlu0 %1269
        %vm1271 = vcmp.eq.f32.partialorder %v1268, %v1270
        %v1272 = vsel %vm1271, %v1267, inf
        %1273 = vmin.xlane.f32.xlu0 %v1272
        %v1274 = vpop.xlane.xlu0 %1273
        %v1275 = vcvt.f32.s32 %v1274
        %v1276 = vcvt.f32.s32 %v1270
        %v1277 = vshll.u32 %v1276, 16
        %v1278 = vadd.s32 %v1277, %v1275
        %v1279 = vsel %vm713, %v869, 2147483647
        %v1280 = vand.u32 %v1279, 65535
        %v1281 = vshra.s32 %v1279, 16
        %v1282 = vcvt.s32.f32 %v1280
        %v1283 = vcvt.s32.f32 %v1281
        %1284 = vmin.xlane.f32.xlu0 %v1283
        %v1285 = vpop.xlane.xlu0 %1284
        %vm1286 = vcmp.eq.f32.partialorder %v1283, %v1285
        %v1287 = vsel %vm1286, %v1282, inf
        %1288 = vmin.xlane.f32.xlu0 %v1287
        %v1289 = vpop.xlane.xlu0 %1288
        %v1290 = vcvt.f32.s32 %v1289
        %v1291 = vcvt.f32.s32 %v1285
        %v1292 = vshll.u32 %v1291, 16
        %v1293 = vadd.s32 %v1292, %v1290
        %v1294 = vsel %vm713, %v870, 2147483647
        %v1295 = vand.u32 %v1294, 65535
        %v1296 = vshra.s32 %v1294, 16
        %v1297 = vcvt.s32.f32 %v1295
        %v1298 = vcvt.s32.f32 %v1296
        %1299 = vmin.xlane.f32.xlu0 %v1298
        %v1300 = vpop.xlane.xlu0 %1299
        %vm1301 = vcmp.eq.f32.partialorder %v1298, %v1300
        %v1302 = vsel %vm1301, %v1297, inf
        %1303 = vmin.xlane.f32.xlu0 %v1302
        %v1304 = vpop.xlane.xlu0 %1303
        %v1305 = vcvt.f32.s32 %v1304
        %v1306 = vcvt.f32.s32 %v1300
        %v1307 = vshll.u32 %v1306, 16
        %v1308 = vadd.s32 %v1307, %v1305
        %v1309 = vsel %vm713, %v871, 2147483647
        %v1310 = vand.u32 %v1309, 65535
        %v1311 = vshra.s32 %v1309, 16
        %v1312 = vcvt.s32.f32 %v1310
        %v1313 = vcvt.s32.f32 %v1311
        %1314 = vmin.xlane.f32.xlu0 %v1313
        %v1315 = vpop.xlane.xlu0 %1314
        %vm1316 = vcmp.eq.f32.partialorder %v1313, %v1315
        %v1317 = vsel %vm1316, %v1312, inf
        %1318 = vmin.xlane.f32.xlu0 %v1317
        %v1319 = vpop.xlane.xlu0 %1318
        %v1320 = vcvt.f32.s32 %v1319
        %v1321 = vcvt.f32.s32 %v1315
        %v1322 = vshll.u32 %v1321, 16
        %v1323 = vadd.s32 %v1322, %v1320
        %v1324 = vsel %vm713, %v872, 2147483647
        %v1325 = vand.u32 %v1324, 65535
        %v1326 = vshra.s32 %v1324, 16
        %v1327 = vcvt.s32.f32 %v1325
        %v1328 = vcvt.s32.f32 %v1326
        %1329 = vmin.xlane.f32.xlu0 %v1328
        %v1330 = vpop.xlane.xlu0 %1329
        %vm1331 = vcmp.eq.f32.partialorder %v1328, %v1330
        %v1332 = vsel %vm1331, %v1327, inf
        %1333 = vmin.xlane.f32.xlu0 %v1332
        %v1334 = vpop.xlane.xlu0 %1333
        %v1335 = vcvt.f32.s32 %v1334
        %v1336 = vcvt.f32.s32 %v1330
        %v1337 = vshll.u32 %v1336, 16
        %v1338 = vadd.s32 %v1337, %v1335
        %v1339 = vsel %vm713, %v873, 2147483647
        %v1340 = vand.u32 %v1339, 65535
        %v1341 = vshra.s32 %v1339, 16
        %v1342 = vcvt.s32.f32 %v1340
        %v1343 = vcvt.s32.f32 %v1341
        %1344 = vmin.xlane.f32.xlu0 %v1343
        %v1345 = vpop.xlane.xlu0 %1344
        %vm1346 = vcmp.eq.f32.partialorder %v1343, %v1345
        %v1347 = vsel %vm1346, %v1342, inf
        %1348 = vmin.xlane.f32.xlu0 %v1347
        %v1349 = vpop.xlane.xlu0 %1348
        %v1350 = vcvt.f32.s32 %v1349
        %v1351 = vcvt.f32.s32 %v1345
        %v1352 = vshll.u32 %v1351, 16
        %v1353 = vadd.s32 %v1352, %v1350
        %vm1354 = vcmask 7168
        %1355 = vst.msk [vmem:[%s282] sm:$0xff] %vm1354, %v888
        %1356 = vst.msk [vmem:[%s282 + $0x8] sm:$0xff] %vm1354, %v903
        %1357 = vst.msk [vmem:[%s282 + $0x10] sm:$0xff] %vm1354, %v918
        %1358 = vst.msk [vmem:[%s282 + $0x18] sm:$0xff] %vm1354, %v933
        %1359 = vst.msk [vmem:[%s282 + $0x20] sm:$0xff] %vm1354, %v948
        %1360 = vst.msk [vmem:[%s282 + $0x28] sm:$0xff] %vm1354, %v963
        %1361 = vst.msk [vmem:[%s282 + $0x30] sm:$0xff] %vm1354, %v978
        %1362 = vst.msk [vmem:[%s282 + $0x38] sm:$0xff] %vm1354, %v993
        %1363 = vst.msk [vmem:[%s282 + $0x40] sm:$0xff] %vm1354, %v1008
        %1364 = vst.msk [vmem:[%s282 + $0x48] sm:$0xff] %vm1354, %v1023
        %1365 = vst.msk [vmem:[%s282 + $0x50] sm:$0xff] %vm1354, %v1038
        %1366 = vst.msk [vmem:[%s282 + $0x58] sm:$0xff] %vm1354, %v1053
        %1367 = vst.msk [vmem:[%s282 + $0x60] sm:$0xff] %vm1354, %v1068
        %1368 = vst.msk [vmem:[%s282 + $0x68] sm:$0xff] %vm1354, %v1083
        %1369 = vst.msk [vmem:[%s282 + $0x70] sm:$0xff] %vm1354, %v1098
        %1370 = vst.msk [vmem:[%s282 + $0x78] sm:$0xff] %vm1354, %v1113
        %1371 = vst.msk [vmem:[%s282 + $0x80] sm:$0xff] %vm1354, %v1128
        %1372 = vst.msk [vmem:[%s282 + $0x88] sm:$0xff] %vm1354, %v1143
        %1373 = vst.msk [vmem:[%s282 + $0x90] sm:$0xff] %vm1354, %v1158
        %1374 = vst.msk [vmem:[%s282 + $0x98] sm:$0xff] %vm1354, %v1173
        %1375 = vst.msk [vmem:[%s282 + $0xa0] sm:$0xff] %vm1354, %v1188
        %1376 = vst.msk [vmem:[%s282 + $0xa8] sm:$0xff] %vm1354, %v1203
        %1377 = vst.msk [vmem:[%s282 + $0xb0] sm:$0xff] %vm1354, %v1218
        %1378 = vst.msk [vmem:[%s282 + $0xb8] sm:$0xff] %vm1354, %v1233
        %1379 = vst.msk [vmem:[%s282 + $0xc0] sm:$0xff] %vm1354, %v1248
        %1380 = vst.msk [vmem:[%s282 + $0xc8] sm:$0xff] %vm1354, %v1263
        %1381 = vst.msk [vmem:[%s282 + $0xd0] sm:$0xff] %vm1354, %v1278
        %1382 = vst.msk [vmem:[%s282 + $0xd8] sm:$0xff] %vm1354, %v1293
        %1383 = vst.msk [vmem:[%s282 + $0xe0] sm:$0xff] %vm1354, %v1308
        %1384 = vst.msk [vmem:[%s282 + $0xe8] sm:$0xff] %vm1354, %v1323
        %1385 = vst.msk [vmem:[%s282 + $0xf0] sm:$0xff] %vm1354, %v1338
        %1386 = vst.msk [vmem:[%s282 + $0xf8] sm:$0xff] %vm1354, %v1353
        %v1387 = vld [vmem:[%s4] ss:$2 sm:$0x7]
        %s1388 = scalar_lea.vmem %s4, 1
        %v1389 = vld [vmem:[%s1388] ss:$2 sm:$0x7]
        %vm1390 = vcmp.eq.s32.totalorder %v1389, 1
        %v1391 = vmax.f32 %v390, 0.0
        %v1392 = vmax.f32 %v503, 0.0
        %v1393 = vmax.f32 %v616, 0.0
        %v1394 = vmax.f32 %v393, 0.0
        %v1395 = vmax.f32 %v506, 0.0
        %v1396 = vmax.f32 %v619, 0.0
        %v1397 = vmax.f32 %v396, 0.0
        %v1398 = vmax.f32 %v509, 0.0
        %v1399 = vmax.f32 %v622, 0.0
        %v1400 = vmax.f32 %v399, 0.0
        %v1401 = vmax.f32 %v512, 0.0
        %v1402 = vmax.f32 %v625, 0.0
        %v1403 = vmax.f32 %v402, 0.0
        %v1404 = vmax.f32 %v515, 0.0
        %v1405 = vmax.f32 %v628, 0.0
        %v1406 = vmax.f32 %v405, 0.0
        %v1407 = vmax.f32 %v518, 0.0
        %v1408 = vmax.f32 %v631, 0.0
        %v1409 = vmax.f32 %v408, 0.0
        %v1410 = vmax.f32 %v521, 0.0
        %v1411 = vmax.f32 %v634, 0.0
        %v1412 = vmax.f32 %v411, 0.0
        %v1413 = vmax.f32 %v524, 0.0
        %v1414 = vmax.f32 %v637, 0.0
        %v1415 = vmax.f32 %v414, 0.0
        %v1416 = vmax.f32 %v527, 0.0
        %v1417 = vmax.f32 %v640, 0.0
        %v1418 = vmax.f32 %v417, 0.0
        %v1419 = vmax.f32 %v530, 0.0
        %v1420 = vmax.f32 %v643, 0.0
        %v1421 = vmax.f32 %v420, 0.0
        %v1422 = vmax.f32 %v533, 0.0
        %v1423 = vmax.f32 %v646, 0.0
        %v1424 = vmax.f32 %v423, 0.0
        %v1425 = vmax.f32 %v536, 0.0
        %v1426 = vmax.f32 %v649, 0.0
        %v1427 = vmax.f32 %v426, 0.0
        %v1428 = vmax.f32 %v539, 0.0
        %v1429 = vmax.f32 %v652, 0.0
        %v1430 = vmax.f32 %v429, 0.0
        %v1431 = vmax.f32 %v542, 0.0
        %v1432 = vmax.f32 %v655, 0.0
        %v1433 = vmax.f32 %v432, 0.0
        %v1434 = vmax.f32 %v545, 0.0
        %v1435 = vmax.f32 %v658, 0.0
        %v1436 = vmax.f32 %v435, 0.0
        %v1437 = vmax.f32 %v548, 0.0
        %v1438 = vmax.f32 %v661, 0.0
        %v1439 = vmax.f32 %v438, 0.0
        %v1440 = vmax.f32 %v551, 0.0
        %v1441 = vmax.f32 %v664, 0.0
        %v1442 = vmax.f32 %v441, 0.0
        %v1443 = vmax.f32 %v554, 0.0
        %v1444 = vmax.f32 %v667, 0.0
        %v1445 = vmax.f32 %v444, 0.0
        %v1446 = vmax.f32 %v557, 0.0
        %v1447 = vmax.f32 %v670, 0.0
        %v1448 = vmax.f32 %v447, 0.0
        %v1449 = vmax.f32 %v560, 0.0
        %v1450 = vmax.f32 %v673, 0.0
        %v1451 = vmax.f32 %v450, 0.0
        %v1452 = vmax.f32 %v563, 0.0
        %v1453 = vmax.f32 %v676, 0.0
        %v1454 = vmax.f32 %v453, 0.0
        %v1455 = vmax.f32 %v566, 0.0
        %v1456 = vmax.f32 %v679, 0.0
        %v1457 = vmax.f32 %v456, 0.0
        %v1458 = vmax.f32 %v569, 0.0
        %v1459 = vmax.f32 %v682, 0.0
        %v1460 = vmax.f32 %v459, 0.0
        %v1461 = vmax.f32 %v572, 0.0
        %v1462 = vmax.f32 %v685, 0.0
        %v1463 = vmax.f32 %v462, 0.0
        %v1464 = vmax.f32 %v575, 0.0
        %v1465 = vmax.f32 %v688, 0.0
        %v1466 = vmax.f32 %v465, 0.0
        %v1467 = vmax.f32 %v578, 0.0
        %v1468 = vmax.f32 %v691, 0.0
        %v1469 = vmax.f32 %v468, 0.0
        %v1470 = vmax.f32 %v581, 0.0
        %v1471 = vmax.f32 %v694, 0.0
        %v1472 = vmax.f32 %v471, 0.0
        %v1473 = vmax.f32 %v584, 0.0
        %v1474 = vmax.f32 %v697, 0.0
        %v1475 = vmax.f32 %v474, 0.0
        %v1476 = vmax.f32 %v587, 0.0
        %v1477 = vmax.f32 %v700, 0.0
        %v1478 = vmax.f32 %v477, 0.0
        %v1479 = vmax.f32 %v590, 0.0
        %v1480 = vmax.f32 %v703, 0.0
        %v1481 = vmax.f32 %v480, 0.0
        %v1482 = vmax.f32 %v593, 0.0
        %v1483 = vmax.f32 %v706, 0.0
        %v1484 = vmax.f32 %v483, 0.0
        %v1485 = vmax.f32 %v596, 0.0
        %v1486 = vmax.f32 %v709, 0.0
        %v1487 = vsel %vm1390, 1, 0
        %v1488 = vperm.slane %v1487, 0
        %v1489 = vperm.slane %v1487, 1
        %v1490 = vperm.slane %v1487, 2
        %vm1491 = vcmp.eq.s32.totalorder %v1488, 1
        %vm1492 = vcmp.eq.s32.totalorder %v1489, 1
        %vm1493 = vcmp.eq.s32.totalorder %v1490, 1
        %v1494 = vsel %vm1491, %v1391, 1.0
        %v1495 = vsel %vm1492, %v1392, 1.0
        %v1496 = vsel %vm1493, %v1393, 1.0
        %v1497 = vsel %vm1491, %v1394, 1.0
        %v1498 = vsel %vm1492, %v1395, 1.0
        %v1499 = vsel %vm1493, %v1396, 1.0
        %v1500 = vsel %vm1491, %v1397, 1.0
        %v1501 = vsel %vm1492, %v1398, 1.0
        %v1502 = vsel %vm1493, %v1399, 1.0
        %v1503 = vsel %vm1491, %v1400, 1.0
        %v1504 = vsel %vm1492, %v1401, 1.0
        %v1505 = vsel %vm1493, %v1402, 1.0
        %v1506 = vsel %vm1491, %v1403, 1.0
        %v1507 = vsel %vm1492, %v1404, 1.0
        %v1508 = vsel %vm1493, %v1405, 1.0
        %v1509 = vsel %vm1491, %v1406, 1.0
        %v1510 = vsel %vm1492, %v1407, 1.0
        %v1511 = vsel %vm1493, %v1408, 1.0
        %v1512 = vsel %vm1491, %v1409, 1.0
        %v1513 = vsel %vm1492, %v1410, 1.0
        %v1514 = vsel %vm1493, %v1411, 1.0
        %v1515 = vsel %vm1491, %v1412, 1.0
        %v1516 = vsel %vm1492, %v1413, 1.0
        %v1517 = vsel %vm1493, %v1414, 1.0
        %v1518 = vsel %vm1491, %v1415, 1.0
        %v1519 = vsel %vm1492, %v1416, 1.0
        %v1520 = vsel %vm1493, %v1417, 1.0
        %v1521 = vsel %vm1491, %v1418, 1.0
        %v1522 = vsel %vm1492, %v1419, 1.0
        %v1523 = vsel %vm1493, %v1420, 1.0
        %v1524 = vsel %vm1491, %v1421, 1.0
        %v1525 = vsel %vm1492, %v1422, 1.0
        %v1526 = vsel %vm1493, %v1423, 1.0
        %v1527 = vsel %vm1491, %v1424, 1.0
        %v1528 = vsel %vm1492, %v1425, 1.0
        %v1529 = vsel %vm1493, %v1426, 1.0
        %v1530 = vsel %vm1491, %v1427, 1.0
        %v1531 = vsel %vm1492, %v1428, 1.0
        %v1532 = vsel %vm1493, %v1429, 1.0
        %v1533 = vsel %vm1491, %v1430, 1.0
        %v1534 = vsel %vm1492, %v1431, 1.0
        %v1535 = vsel %vm1493, %v1432, 1.0
        %v1536 = vsel %vm1491, %v1433, 1.0
        %v1537 = vsel %vm1492, %v1434, 1.0
        %v1538 = vsel %vm1493, %v1435, 1.0
        %v1539 = vsel %vm1491, %v1436, 1.0
        %v1540 = vsel %vm1492, %v1437, 1.0
        %v1541 = vsel %vm1493, %v1438, 1.0
        %v1542 = vsel %vm1491, %v1439, 1.0
        %v1543 = vsel %vm1492, %v1440, 1.0
        %v1544 = vsel %vm1493, %v1441, 1.0
        %v1545 = vsel %vm1491, %v1442, 1.0
        %v1546 = vsel %vm1492, %v1443, 1.0
        %v1547 = vsel %vm1493, %v1444, 1.0
        %v1548 = vsel %vm1491, %v1445, 1.0
        %v1549 = vsel %vm1492, %v1446, 1.0
        %v1550 = vsel %vm1493, %v1447, 1.0
        %v1551 = vsel %vm1491, %v1448, 1.0
        %v1552 = vsel %vm1492, %v1449, 1.0
        %v1553 = vsel %vm1493, %v1450, 1.0
        %v1554 = vsel %vm1491, %v1451, 1.0
        %v1555 = vsel %vm1492, %v1452, 1.0
        %v1556 = vsel %vm1493, %v1453, 1.0
        %v1557 = vsel %vm1491, %v1454, 1.0
        %v1558 = vsel %vm1492, %v1455, 1.0
        %v1559 = vsel %vm1493, %v1456, 1.0
        %v1560 = vsel %vm1491, %v1457, 1.0
        %v1561 = vsel %vm1492, %v1458, 1.0
        %v1562 = vsel %vm1493, %v1459, 1.0
        %v1563 = vsel %vm1491, %v1460, 1.0
        %v1564 = vsel %vm1492, %v1461, 1.0
        %v1565 = vsel %vm1493, %v1462, 1.0
        %v1566 = vsel %vm1491, %v1463, 1.0
        %v1567 = vsel %vm1492, %v1464, 1.0
        %v1568 = vsel %vm1493, %v1465, 1.0
        %v1569 = vsel %vm1491, %v1466, 1.0
        %v1570 = vsel %vm1492, %v1467, 1.0
        %v1571 = vsel %vm1493, %v1468, 1.0
        %v1572 = vsel %vm1491, %v1469, 1.0
        %v1573 = vsel %vm1492, %v1470, 1.0
        %v1574 = vsel %vm1493, %v1471, 1.0
        %v1575 = vsel %vm1491, %v1472, 1.0
        %v1576 = vsel %vm1492, %v1473, 1.0
        %v1577 = vsel %vm1493, %v1474, 1.0
        %v1578 = vsel %vm1491, %v1475, 1.0
        %v1579 = vsel %vm1492, %v1476, 1.0
        %v1580 = vsel %vm1493, %v1477, 1.0
        %v1581 = vsel %vm1491, %v1478, 1.0
        %v1582 = vsel %vm1492, %v1479, 1.0
        %v1583 = vsel %vm1493, %v1480, 1.0
        %v1584 = vsel %vm1491, %v1481, 1.0
        %v1585 = vsel %vm1492, %v1482, 1.0
        %v1586 = vsel %vm1493, %v1483, 1.0
        %v1587 = vsel %vm1491, %v1484, 1.0
        %v1588 = vsel %vm1492, %v1485, 1.0
        %v1589 = vsel %vm1493, %v1486, 1.0
        %v1590 = vperm.slane %v1387, 0
        %v1591 = vperm.slane %v1387, 1
        %v1592 = vperm.slane %v1387, 2
        %vm1593 = vcmp.eq.s32.totalorder %v1590, %v888
        %vm1594 = vcmp.eq.s32.totalorder %v1591, %v888
        %vm1595 = vcmp.eq.s32.totalorder %v1592, %v888
        %vm1596 = vcmp.eq.s32.totalorder %v1590, %v903
        %vm1597 = vcmp.eq.s32.totalorder %v1591, %v903
        %vm1598 = vcmp.eq.s32.totalorder %v1592, %v903
        %vm1599 = vcmp.eq.s32.totalorder %v1590, %v918
        %vm1600 = vcmp.eq.s32.totalorder %v1591, %v918
        %vm1601 = vcmp.eq.s32.totalorder %v1592, %v918
        %vm1602 = vcmp.eq.s32.totalorder %v1590, %v933
        %vm1603 = vcmp.eq.s32.totalorder %v1591, %v933
        %vm1604 = vcmp.eq.s32.totalorder %v1592, %v933
        %vm1605 = vcmp.eq.s32.totalorder %v1590, %v948
        %vm1606 = vcmp.eq.s32.totalorder %v1591, %v948
        %vm1607 = vcmp.eq.s32.totalorder %v1592, %v948
        %vm1608 = vcmp.eq.s32.totalorder %v1590, %v963
        %vm1609 = vcmp.eq.s32.totalorder %v1591, %v963
        %vm1610 = vcmp.eq.s32.totalorder %v1592, %v963
        %vm1611 = vcmp.eq.s32.totalorder %v1590, %v978
        %vm1612 = vcmp.eq.s32.totalorder %v1591, %v978
        %vm1613 = vcmp.eq.s32.totalorder %v1592, %v978
        %vm1614 = vcmp.eq.s32.totalorder %v1590, %v993
        %vm1615 = vcmp.eq.s32.totalorder %v1591, %v993
        %vm1616 = vcmp.eq.s32.totalorder %v1592, %v993
        %vm1617 = vcmp.eq.s32.totalorder %v1590, %v1008
        %vm1618 = vcmp.eq.s32.totalorder %v1591, %v1008
        %vm1619 = vcmp.eq.s32.totalorder %v1592, %v1008
        %vm1620 = vcmp.eq.s32.totalorder %v1590, %v1023
        %vm1621 = vcmp.eq.s32.totalorder %v1591, %v1023
        %vm1622 = vcmp.eq.s32.totalorder %v1592, %v1023
        %vm1623 = vcmp.eq.s32.totalorder %v1590, %v1038
        %vm1624 = vcmp.eq.s32.totalorder %v1591, %v1038
        %vm1625 = vcmp.eq.s32.totalorder %v1592, %v1038
        %vm1626 = vcmp.eq.s32.totalorder %v1590, %v1053
        %vm1627 = vcmp.eq.s32.totalorder %v1591, %v1053
        %vm1628 = vcmp.eq.s32.totalorder %v1592, %v1053
        %vm1629 = vcmp.eq.s32.totalorder %v1590, %v1068
        %vm1630 = vcmp.eq.s32.totalorder %v1591, %v1068
        %vm1631 = vcmp.eq.s32.totalorder %v1592, %v1068
        %vm1632 = vcmp.eq.s32.totalorder %v1590, %v1083
        %vm1633 = vcmp.eq.s32.totalorder %v1591, %v1083
        %vm1634 = vcmp.eq.s32.totalorder %v1592, %v1083
        %vm1635 = vcmp.eq.s32.totalorder %v1590, %v1098
        %vm1636 = vcmp.eq.s32.totalorder %v1591, %v1098
        %vm1637 = vcmp.eq.s32.totalorder %v1592, %v1098
        %vm1638 = vcmp.eq.s32.totalorder %v1590, %v1113
        %vm1639 = vcmp.eq.s32.totalorder %v1591, %v1113
        %vm1640 = vcmp.eq.s32.totalorder %v1592, %v1113
        %vm1641 = vcmp.eq.s32.totalorder %v1590, %v1128
        %vm1642 = vcmp.eq.s32.totalorder %v1591, %v1128
        %vm1643 = vcmp.eq.s32.totalorder %v1592, %v1128
        %vm1644 = vcmp.eq.s32.totalorder %v1590, %v1143
        %vm1645 = vcmp.eq.s32.totalorder %v1591, %v1143
        %vm1646 = vcmp.eq.s32.totalorder %v1592, %v1143
        %vm1647 = vcmp.eq.s32.totalorder %v1590, %v1158
        %vm1648 = vcmp.eq.s32.totalorder %v1591, %v1158
        %vm1649 = vcmp.eq.s32.totalorder %v1592, %v1158
        %vm1650 = vcmp.eq.s32.totalorder %v1590, %v1173
        %vm1651 = vcmp.eq.s32.totalorder %v1591, %v1173
        %vm1652 = vcmp.eq.s32.totalorder %v1592, %v1173
        %vm1653 = vcmp.eq.s32.totalorder %v1590, %v1188
        %vm1654 = vcmp.eq.s32.totalorder %v1591, %v1188
        %vm1655 = vcmp.eq.s32.totalorder %v1592, %v1188
        %vm1656 = vcmp.eq.s32.totalorder %v1590, %v1203
        %vm1657 = vcmp.eq.s32.totalorder %v1591, %v1203
        %vm1658 = vcmp.eq.s32.totalorder %v1592, %v1203
        %vm1659 = vcmp.eq.s32.totalorder %v1590, %v1218
        %vm1660 = vcmp.eq.s32.totalorder %v1591, %v1218
        %vm1661 = vcmp.eq.s32.totalorder %v1592, %v1218
        %vm1662 = vcmp.eq.s32.totalorder %v1590, %v1233
        %vm1663 = vcmp.eq.s32.totalorder %v1591, %v1233
        %vm1664 = vcmp.eq.s32.totalorder %v1592, %v1233
        %vm1665 = vcmp.eq.s32.totalorder %v1590, %v1248
        %vm1666 = vcmp.eq.s32.totalorder %v1591, %v1248
        %vm1667 = vcmp.eq.s32.totalorder %v1592, %v1248
        %vm1668 = vcmp.eq.s32.totalorder %v1590, %v1263
        %vm1669 = vcmp.eq.s32.totalorder %v1591, %v1263
        %vm1670 = vcmp.eq.s32.totalorder %v1592, %v1263
        %vm1671 = vcmp.eq.s32.totalorder %v1590, %v1278
        %vm1672 = vcmp.eq.s32.totalorder %v1591, %v1278
        %vm1673 = vcmp.eq.s32.totalorder %v1592, %v1278
        %vm1674 = vcmp.eq.s32.totalorder %v1590, %v1293
        %vm1675 = vcmp.eq.s32.totalorder %v1591, %v1293
        %vm1676 = vcmp.eq.s32.totalorder %v1592, %v1293
        %vm1677 = vcmp.eq.s32.totalorder %v1590, %v1308
        %vm1678 = vcmp.eq.s32.totalorder %v1591, %v1308
        %vm1679 = vcmp.eq.s32.totalorder %v1592, %v1308
        %vm1680 = vcmp.eq.s32.totalorder %v1590, %v1323
        %vm1681 = vcmp.eq.s32.totalorder %v1591, %v1323
        %vm1682 = vcmp.eq.s32.totalorder %v1592, %v1323
        %vm1683 = vcmp.eq.s32.totalorder %v1590, %v1338
        %vm1684 = vcmp.eq.s32.totalorder %v1591, %v1338
        %vm1685 = vcmp.eq.s32.totalorder %v1592, %v1338
        %vm1686 = vcmp.eq.s32.totalorder %v1590, %v1353
        %vm1687 = vcmp.eq.s32.totalorder %v1591, %v1353
        %vm1688 = vcmp.eq.s32.totalorder %v1592, %v1353
        %v1689 = vsel %vm1593, %v1494, 0.0
        %v1690 = vsel %vm1594, %v1495, 0.0
        %v1691 = vsel %vm1595, %v1496, 0.0
        %v1692 = vsel %vm1596, %v1497, 0.0
        %v1693 = vsel %vm1597, %v1498, 0.0
        %v1694 = vsel %vm1598, %v1499, 0.0
        %v1695 = vsel %vm1599, %v1500, 0.0
        %v1696 = vsel %vm1600, %v1501, 0.0
        %v1697 = vsel %vm1601, %v1502, 0.0
        %v1698 = vsel %vm1602, %v1503, 0.0
        %v1699 = vsel %vm1603, %v1504, 0.0
        %v1700 = vsel %vm1604, %v1505, 0.0
        %v1701 = vsel %vm1605, %v1506, 0.0
        %v1702 = vsel %vm1606, %v1507, 0.0
        %v1703 = vsel %vm1607, %v1508, 0.0
        %v1704 = vsel %vm1608, %v1509, 0.0
        %v1705 = vsel %vm1609, %v1510, 0.0
        %v1706 = vsel %vm1610, %v1511, 0.0
        %v1707 = vsel %vm1611, %v1512, 0.0
        %v1708 = vsel %vm1612, %v1513, 0.0
        %v1709 = vsel %vm1613, %v1514, 0.0
        %v1710 = vsel %vm1614, %v1515, 0.0
        %v1711 = vsel %vm1615, %v1516, 0.0
        %v1712 = vsel %vm1616, %v1517, 0.0
        %v1713 = vsel %vm1617, %v1518, 0.0
        %v1714 = vsel %vm1618, %v1519, 0.0
        %v1715 = vsel %vm1619, %v1520, 0.0
        %v1716 = vsel %vm1620, %v1521, 0.0
        %v1717 = vsel %vm1621, %v1522, 0.0
        %v1718 = vsel %vm1622, %v1523, 0.0
        %v1719 = vsel %vm1623, %v1524, 0.0
        %v1720 = vsel %vm1624, %v1525, 0.0
        %v1721 = vsel %vm1625, %v1526, 0.0
        %v1722 = vsel %vm1626, %v1527, 0.0
        %v1723 = vsel %vm1627, %v1528, 0.0
        %v1724 = vsel %vm1628, %v1529, 0.0
        %v1725 = vsel %vm1629, %v1530, 0.0
        %v1726 = vsel %vm1630, %v1531, 0.0
        %v1727 = vsel %vm1631, %v1532, 0.0
        %v1728 = vsel %vm1632, %v1533, 0.0
        %v1729 = vsel %vm1633, %v1534, 0.0
        %v1730 = vsel %vm1634, %v1535, 0.0
        %v1731 = vsel %vm1635, %v1536, 0.0
        %v1732 = vsel %vm1636, %v1537, 0.0
        %v1733 = vsel %vm1637, %v1538, 0.0
        %v1734 = vsel %vm1638, %v1539, 0.0
        %v1735 = vsel %vm1639, %v1540, 0.0
        %v1736 = vsel %vm1640, %v1541, 0.0
        %v1737 = vsel %vm1641, %v1542, 0.0
        %v1738 = vsel %vm1642, %v1543, 0.0
        %v1739 = vsel %vm1643, %v1544, 0.0
        %v1740 = vsel %vm1644, %v1545, 0.0
        %v1741 = vsel %vm1645, %v1546, 0.0
        %v1742 = vsel %vm1646, %v1547, 0.0
        %v1743 = vsel %vm1647, %v1548, 0.0
        %v1744 = vsel %vm1648, %v1549, 0.0
        %v1745 = vsel %vm1649, %v1550, 0.0
        %v1746 = vsel %vm1650, %v1551, 0.0
        %v1747 = vsel %vm1651, %v1552, 0.0
        %v1748 = vsel %vm1652, %v1553, 0.0
        %v1749 = vsel %vm1653, %v1554, 0.0
        %v1750 = vsel %vm1654, %v1555, 0.0
        %v1751 = vsel %vm1655, %v1556, 0.0
        %v1752 = vsel %vm1656, %v1557, 0.0
        %v1753 = vsel %vm1657, %v1558, 0.0
        %v1754 = vsel %vm1658, %v1559, 0.0
        %v1755 = vsel %vm1659, %v1560, 0.0
        %v1756 = vsel %vm1660, %v1561, 0.0
        %v1757 = vsel %vm1661, %v1562, 0.0
        %v1758 = vsel %vm1662, %v1563, 0.0
        %v1759 = vsel %vm1663, %v1564, 0.0
        %v1760 = vsel %vm1664, %v1565, 0.0
        %v1761 = vsel %vm1665, %v1566, 0.0
        %v1762 = vsel %vm1666, %v1567, 0.0
        %v1763 = vsel %vm1667, %v1568, 0.0
        %v1764 = vsel %vm1668, %v1569, 0.0
        %v1765 = vsel %vm1669, %v1570, 0.0
        %v1766 = vsel %vm1670, %v1571, 0.0
        %v1767 = vsel %vm1671, %v1572, 0.0
        %v1768 = vsel %vm1672, %v1573, 0.0
        %v1769 = vsel %vm1673, %v1574, 0.0
        %v1770 = vsel %vm1674, %v1575, 0.0
        %v1771 = vsel %vm1675, %v1576, 0.0
        %v1772 = vsel %vm1676, %v1577, 0.0
        %v1773 = vsel %vm1677, %v1578, 0.0
        %v1774 = vsel %vm1678, %v1579, 0.0
        %v1775 = vsel %vm1679, %v1580, 0.0
        %v1776 = vsel %vm1680, %v1581, 0.0
        %v1777 = vsel %vm1681, %v1582, 0.0
        %v1778 = vsel %vm1682, %v1583, 0.0
        %v1779 = vsel %vm1683, %v1584, 0.0
        %v1780 = vsel %vm1684, %v1585, 0.0
        %v1781 = vsel %vm1685, %v1586, 0.0
        %v1782 = vsel %vm1686, %v1587, 0.0
        %v1783 = vsel %vm1687, %v1588, 0.0
        %v1784 = vsel %vm1688, %v1589, 0.0
        %v1785 = vld [vmem:[#allocation2] sm:$0xff]
        %v1786 = vld [vmem:[#allocation2 + $0x8] sm:$0xff]
        %v1787 = vld [vmem:[#allocation2 + $0x10] sm:$0xff]
        %v1788 = vld [vmem:[#allocation2 + $0x18] sm:$0xff]
        %v1789 = vld [vmem:[#allocation2 + $0x20] sm:$0xff]
        %v1790 = vld [vmem:[#allocation2 + $0x28] sm:$0xff]
        %v1791 = vld [vmem:[#allocation2 + $0x30] sm:$0xff]
        %v1792 = vld [vmem:[#allocation2 + $0x38] sm:$0xff]
        %v1793 = vld [vmem:[#allocation2 + $0x40] sm:$0xff]
        %v1794 = vld [vmem:[#allocation2 + $0x48] sm:$0xff]
        %v1795 = vld [vmem:[#allocation2 + $0x50] sm:$0xff]
        %v1796 = vld [vmem:[#allocation2 + $0x58] sm:$0xff]
        %v1797 = vld [vmem:[#allocation2 + $0x60] sm:$0xff]
        %v1798 = vld [vmem:[#allocation2 + $0x68] sm:$0xff]
        %v1799 = vld [vmem:[#allocation2 + $0x70] sm:$0xff]
        %v1800 = vld [vmem:[#allocation2 + $0x78] sm:$0xff]
        %v1801 = vld [vmem:[#allocation2 + $0x80] sm:$0xff]
        %v1802 = vld [vmem:[#allocation2 + $0x88] sm:$0xff]
        %v1803 = vld [vmem:[#allocation2 + $0x90] sm:$0xff]
        %v1804 = vld [vmem:[#allocation2 + $0x98] sm:$0xff]
        %v1805 = vld [vmem:[#allocation2 + $0xa0] sm:$0xff]
        %v1806 = vld [vmem:[#allocation2 + $0xa8] sm:$0xff]
        %v1807 = vld [vmem:[#allocation2 + $0xb0] sm:$0xff]
        %v1808 = vld [vmem:[#allocation2 + $0xb8] sm:$0xff]
        %v1809 = vld [vmem:[#allocation2 + $0xc0] sm:$0xff]
        %v1810 = vld [vmem:[#allocation2 + $0xc8] sm:$0xff]
        %v1811 = vld [vmem:[#allocation2 + $0xd0] sm:$0xff]
        %v1812 = vld [vmem:[#allocation2 + $0xd8] sm:$0xff]
        %v1813 = vld [vmem:[#allocation2 + $0xe0] sm:$0xff]
        %v1814 = vld [vmem:[#allocation2 + $0xe8] sm:$0xff]
        %v1815 = vld [vmem:[#allocation2 + $0xf0] sm:$0xff]
        %v1816 = vld [vmem:[#allocation2 + $0xf8] sm:$0xff]
        %v1817 = vld [vmem:[#allocation2 + $0x100] sm:$0xff]
        %v1819 = vsel %vm713, %v1691, 0
        %v1822 = vsel %vm713, %v1694, 0
        %v1825 = vsel %vm713, %v1697, 0
        %v1828 = vsel %vm713, %v1700, 0
        %v1831 = vsel %vm713, %v1703, 0
        %v1834 = vsel %vm713, %v1706, 0
        %v1837 = vsel %vm713, %v1709, 0
        %v1840 = vsel %vm713, %v1712, 0
        %v1843 = vsel %vm713, %v1715, 0
        %v1846 = vsel %vm713, %v1718, 0
        %v1849 = vsel %vm713, %v1721, 0
        %v1852 = vsel %vm713, %v1724, 0
        %v1855 = vsel %vm713, %v1727, 0
        %v1858 = vsel %vm713, %v1730, 0
        %v1861 = vsel %vm713, %v1733, 0
        %v1864 = vsel %vm713, %v1736, 0
        %v1867 = vsel %vm713, %v1739, 0
        %v1870 = vsel %vm713, %v1742, 0
        %v1873 = vsel %vm713, %v1745, 0
        %v1876 = vsel %vm713, %v1748, 0
        %v1879 = vsel %vm713, %v1751, 0
        %v1882 = vsel %vm713, %v1754, 0
        %v1885 = vsel %vm713, %v1757, 0
        %v1888 = vsel %vm713, %v1760, 0
        %v1891 = vsel %vm713, %v1763, 0
        %v1894 = vsel %vm713, %v1766, 0
        %v1897 = vsel %vm713, %v1769, 0
        %v1900 = vsel %vm713, %v1772, 0
        %v1903 = vsel %vm713, %v1775, 0
        %v1906 = vsel %vm713, %v1778, 0
        %v1909 = vsel %vm713, %v1781, 0
        %v1912 = vsel %vm713, %v1784, 0
        %1914 = vmatpush.msra.mxu0 %v1800
        %1915 = vmatpush.msra.mxu0 %v1799
        %1916 = vmatpush.msra.mxu0 %v1798
        %1917 = vmatpush.msra.mxu0 %v1797
        %1918 = vmatpush.msra.mxu0 %v1796
        %1919 = vmatpush.msra.mxu0 %v1795
        %1920 = vmatpush.msra.mxu0 %v1794
        %1921 = vmatpush.msra.mxu0 %v1793
        %1922 = vmatpush.msra.mxu0 %v1792
        %1923 = vmatpush.msra.mxu0 %v1791
        %1924 = vmatpush.msra.mxu0 %v1790
        %1925 = vmatpush.msra.mxu0 %v1789
        %1926 = vmatpush.msra.mxu0 %v1788
        %1927 = vmatpush.msra.mxu0 %v1787
        %1928 = vmatpush.msra.mxu0 %v1786
        %1929 = vmatpush.msra.mxu0 %v1785
        %1930 = vmatmul.f32.gmra.mxu0 %v1689
        %v1931 = vpop.f32.mrf.mxu0
        %v1932 = vadd.f32 0.0, %v1931
        %1933 = vmatmul.f32.gmra.mxu0 %v1692
        %v1934 = vpop.f32.mrf.mxu0
        %v1935 = vadd.f32 0.0, %v1934
        %1936 = vmatmul.f32.gmra.mxu0 %v1695
        %v1937 = vpop.f32.mrf.mxu0
        %v1938 = vadd.f32 0.0, %v1937
        %1939 = vmatmul.f32.gmra.mxu0 %v1698
        %v1940 = vpop.f32.mrf.mxu0
        %v1941 = vadd.f32 0.0, %v1940
        %1942 = vmatmul.f32.gmra.mxu0 %v1701
        %v1943 = vpop.f32.mrf.mxu0
        %v1944 = vadd.f32 0.0, %v1943
        %1945 = vmatmul.f32.gmra.mxu0 %v1704
        %v1946 = vpop.f32.mrf.mxu0
        %v1947 = vadd.f32 0.0, %v1946
        %1948 = vmatmul.f32.gmra.mxu0 %v1707
        %v1949 = vpop.f32.mrf.mxu0
        %v1950 = vadd.f32 0.0, %v1949
        %1951 = vmatmul.f32.gmra.mxu0 %v1710
        %v1952 = vpop.f32.mrf.mxu0
        %v1953 = vadd.f32 0.0, %v1952
        %1954 = vmatmul.f32.gmra.mxu0 %v1713
        %v1955 = vpop.f32.mrf.mxu0
        %v1956 = vadd.f32 0.0, %v1955
        %1957 = vmatmul.f32.gmra.mxu0 %v1716
        %v1958 = vpop.f32.mrf.mxu0
        %v1959 = vadd.f32 0.0, %v1958
        %1960 = vmatmul.f32.gmra.mxu0 %v1719
        %v1961 = vpop.f32.mrf.mxu0
        %v1962 = vadd.f32 0.0, %v1961
        %1963 = vmatmul.f32.gmra.mxu0 %v1722
        %v1964 = vpop.f32.mrf.mxu0
        %v1965 = vadd.f32 0.0, %v1964
        %1966 = vmatmul.f32.gmra.mxu0 %v1725
        %v1967 = vpop.f32.mrf.mxu0
        %v1968 = vadd.f32 0.0, %v1967
        %1969 = vmatmul.f32.gmra.mxu0 %v1728
        %v1970 = vpop.f32.mrf.mxu0
        %v1971 = vadd.f32 0.0, %v1970
        %1972 = vmatmul.f32.gmra.mxu0 %v1731
        %v1973 = vpop.f32.mrf.mxu0
        %v1974 = vadd.f32 0.0, %v1973
        %1975 = vmatmul.f32.gmra.mxu0 %v1734
        %v1976 = vpop.f32.mrf.mxu0
        %v1977 = vadd.f32 0.0, %v1976
        %1978 = vmatmul.f32.gmra.mxu0 %v1737
        %v1979 = vpop.f32.mrf.mxu0
        %v1980 = vadd.f32 0.0, %v1979
        %1981 = vmatmul.f32.gmra.mxu0 %v1740
        %v1982 = vpop.f32.mrf.mxu0
        %v1983 = vadd.f32 0.0, %v1982
        %1984 = vmatmul.f32.gmra.mxu0 %v1743
        %v1985 = vpop.f32.mrf.mxu0
        %v1986 = vadd.f32 0.0, %v1985
        %1987 = vmatmul.f32.gmra.mxu0 %v1746
        %v1988 = vpop.f32.mrf.mxu0
        %v1989 = vadd.f32 0.0, %v1988
        %1990 = vmatmul.f32.gmra.mxu0 %v1749
        %v1991 = vpop.f32.mrf.mxu0
        %v1992 = vadd.f32 0.0, %v1991
        %1993 = vmatmul.f32.gmra.mxu0 %v1752
        %v1994 = vpop.f32.mrf.mxu0
        %v1995 = vadd.f32 0.0, %v1994
        %1996 = vmatmul.f32.gmra.mxu0 %v1755
        %v1997 = vpop.f32.mrf.mxu0
        %v1998 = vadd.f32 0.0, %v1997
        %1999 = vmatmul.f32.gmra.mxu0 %v1758
        %v2000 = vpop.f32.mrf.mxu0
        %v2001 = vadd.f32 0.0, %v2000
        %2002 = vmatmul.f32.gmra.mxu0 %v1761
        %v2003 = vpop.f32.mrf.mxu0
        %v2004 = vadd.f32 0.0, %v2003
        %2005 = vmatmul.f32.gmra.mxu0 %v1764
        %v2006 = vpop.f32.mrf.mxu0
        %v2007 = vadd.f32 0.0, %v2006
        %2008 = vmatmul.f32.gmra.mxu0 %v1767
        %v2009 = vpop.f32.mrf.mxu0
        %v2010 = vadd.f32 0.0, %v2009
        %2011 = vmatmul.f32.gmra.mxu0 %v1770
        %v2012 = vpop.f32.mrf.mxu0
        %v2013 = vadd.f32 0.0, %v2012
        %2014 = vmatmul.f32.gmra.mxu0 %v1773
        %v2015 = vpop.f32.mrf.mxu0
        %v2016 = vadd.f32 0.0, %v2015
        %2017 = vmatmul.f32.gmra.mxu0 %v1776
        %v2018 = vpop.f32.mrf.mxu0
        %v2019 = vadd.f32 0.0, %v2018
        %2020 = vmatmul.f32.gmra.mxu0 %v1779
        %v2021 = vpop.f32.mrf.mxu0
        %v2022 = vadd.f32 0.0, %v2021
        %2023 = vmatmul.f32.gmra.mxu0 %v1782
        %v2024 = vpop.f32.mrf.mxu0
        %v2025 = vadd.f32 0.0, %v2024
        %2026 = vdwg.mxu0
        %2027 = vmatpush.msra.mxu0 %v1816
        %2028 = vmatpush.msra.mxu0 %v1815
        %2029 = vmatpush.msra.mxu0 %v1814
        %2030 = vmatpush.msra.mxu0 %v1813
        %2031 = vmatpush.msra.mxu0 %v1812
        %2032 = vmatpush.msra.mxu0 %v1811
        %2033 = vmatpush.msra.mxu0 %v1810
        %2034 = vmatpush.msra.mxu0 %v1809
        %2035 = vmatpush.msra.mxu0 %v1808
        %2036 = vmatpush.msra.mxu0 %v1807
        %2037 = vmatpush.msra.mxu0 %v1806
        %2038 = vmatpush.msra.mxu0 %v1805
        %2039 = vmatpush.msra.mxu0 %v1804
        %2040 = vmatpush.msra.mxu0 %v1803
        %2041 = vmatpush.msra.mxu0 %v1802
        %2042 = vmatpush.msra.mxu0 %v1801
        %2043 = vmatmul.f32.gmra.mxu0 %v1690
        %v2044 = vpop.f32.mrf.mxu0
        %v2045 = vadd.f32 %v1932, %v2044
        %2046 = vmatmul.f32.gmra.mxu0 %v1693
        %v2047 = vpop.f32.mrf.mxu0
        %v2048 = vadd.f32 %v1935, %v2047
        %2049 = vmatmul.f32.gmra.mxu0 %v1696
        %v2050 = vpop.f32.mrf.mxu0
        %v2051 = vadd.f32 %v1938, %v2050
        %2052 = vmatmul.f32.gmra.mxu0 %v1699
        %v2053 = vpop.f32.mrf.mxu0
        %v2054 = vadd.f32 %v1941, %v2053
        %2055 = vmatmul.f32.gmra.mxu0 %v1702
        %v2056 = vpop.f32.mrf.mxu0
        %v2057 = vadd.f32 %v1944, %v2056
        %2058 = vmatmul.f32.gmra.mxu0 %v1705
        %v2059 = vpop.f32.mrf.mxu0
        %v2060 = vadd.f32 %v1947, %v2059
        %2061 = vmatmul.f32.gmra.mxu0 %v1708
        %v2062 = vpop.f32.mrf.mxu0
        %v2063 = vadd.f32 %v1950, %v2062
        %2064 = vmatmul.f32.gmra.mxu0 %v1711
        %v2065 = vpop.f32.mrf.mxu0
        %v2066 = vadd.f32 %v1953, %v2065
        %2067 = vmatmul.f32.gmra.mxu0 %v1714
        %v2068 = vpop.f32.mrf.mxu0
        %v2069 = vadd.f32 %v1956, %v2068
        %2070 = vmatmul.f32.gmra.mxu0 %v1717
        %v2071 = vpop.f32.mrf.mxu0
        %v2072 = vadd.f32 %v1959, %v2071
        %2073 = vmatmul.f32.gmra.mxu0 %v1720
        %v2074 = vpop.f32.mrf.mxu0
        %v2075 = vadd.f32 %v1962, %v2074
        %2076 = vmatmul.f32.gmra.mxu0 %v1723
        %v2077 = vpop.f32.mrf.mxu0
        %v2078 = vadd.f32 %v1965, %v2077
        %2079 = vmatmul.f32.gmra.mxu0 %v1726
        %v2080 = vpop.f32.mrf.mxu0
        %v2081 = vadd.f32 %v1968, %v2080
        %2082 = vmatmul.f32.gmra.mxu0 %v1729
        %v2083 = vpop.f32.mrf.mxu0
        %v2084 = vadd.f32 %v1971, %v2083
        %2085 = vmatmul.f32.gmra.mxu0 %v1732
        %v2086 = vpop.f32.mrf.mxu0
        %v2087 = vadd.f32 %v1974, %v2086
        %2088 = vmatmul.f32.gmra.mxu0 %v1735
        %v2089 = vpop.f32.mrf.mxu0
        %v2090 = vadd.f32 %v1977, %v2089
        %2091 = vmatmul.f32.gmra.mxu0 %v1738
        %v2092 = vpop.f32.mrf.mxu0
        %v2093 = vadd.f32 %v1980, %v2092
        %2094 = vmatmul.f32.gmra.mxu0 %v1741
        %v2095 = vpop.f32.mrf.mxu0
        %v2096 = vadd.f32 %v1983, %v2095
        %2097 = vmatmul.f32.gmra.mxu0 %v1744
        %v2098 = vpop.f32.mrf.mxu0
        %v2099 = vadd.f32 %v1986, %v2098
        %2100 = vmatmul.f32.gmra.mxu0 %v1747
        %v2101 = vpop.f32.mrf.mxu0
        %v2102 = vadd.f32 %v1989, %v2101
        %2103 = vmatmul.f32.gmra.mxu0 %v1750
        %v2104 = vpop.f32.mrf.mxu0
        %v2105 = vadd.f32 %v1992, %v2104
        %2106 = vmatmul.f32.gmra.mxu0 %v1753
        %v2107 = vpop.f32.mrf.mxu0
        %v2108 = vadd.f32 %v1995, %v2107
        %2109 = vmatmul.f32.gmra.mxu0 %v1756
        %v2110 = vpop.f32.mrf.mxu0
        %v2111 = vadd.f32 %v1998, %v2110
        %2112 = vmatmul.f32.gmra.mxu0 %v1759
        %v2113 = vpop.f32.mrf.mxu0
        %v2114 = vadd.f32 %v2001, %v2113
        %2115 = vmatmul.f32.gmra.mxu0 %v1762
        %v2116 = vpop.f32.mrf.mxu0
        %v2117 = vadd.f32 %v2004, %v2116
        %2118 = vmatmul.f32.gmra.mxu0 %v1765
        %v2119 = vpop.f32.mrf.mxu0
        %v2120 = vadd.f32 %v2007, %v2119
        %2121 = vmatmul.f32.gmra.mxu0 %v1768
        %v2122 = vpop.f32.mrf.mxu0
        %v2123 = vadd.f32 %v2010, %v2122
        %2124 = vmatmul.f32.gmra.mxu0 %v1771
        %v2125 = vpop.f32.mrf.mxu0
        %v2126 = vadd.f32 %v2013, %v2125
        %2127 = vmatmul.f32.gmra.mxu0 %v1774
        %v2128 = vpop.f32.mrf.mxu0
        %v2129 = vadd.f32 %v2016, %v2128
        %2130 = vmatmul.f32.gmra.mxu0 %v1777
        %v2131 = vpop.f32.mrf.mxu0
        %v2132 = vadd.f32 %v2019, %v2131
        %2133 = vmatmul.f32.gmra.mxu0 %v1780
        %v2134 = vpop.f32.mrf.mxu0
        %v2135 = vadd.f32 %v2022, %v2134
        %2136 = vmatmul.f32.gmra.mxu0 %v1783
        %v2137 = vpop.f32.mrf.mxu0
        %v2138 = vadd.f32 %v2025, %v2137
        %2139 = vdwg.mxu0
        %2140 = vmatpush.msra.mxu0 0.0
        %2141 = vmatpush.msra.mxu0 0.0
        %2142 = vmatpush.msra.mxu0 0.0
        %2143 = vmatpush.msra.mxu0 0.0
        %2144 = vmatpush.msra.mxu0 0.0
        %2145 = vmatpush.msra.mxu0 0.0
        %2146 = vmatpush.msra.mxu0 0.0
        %2147 = vmatpush.msra.mxu0 0.0
        %2148 = vmatpush.msra.mxu0 0.0
        %2149 = vmatpush.msra.mxu0 0.0
        %2150 = vmatpush.msra.mxu0 0.0
        %2151 = vmatpush.msra.mxu0 0.0
        %2152 = vmatpush.msra.mxu0 0.0
        %2153 = vmatpush.msra.mxu0 0.0
        %2154 = vmatpush.msra.mxu0 0.0
        %2155 = vmatpush.msra.mxu0 %v1817
        %2156 = vmatmul.f32.gmra.mxu0 %v1819
        %v2157 = vpop.f32.mrf.mxu0
        %v2158 = vadd.f32 %v2045, %v2157
        %2159 = vmatmul.f32.gmra.mxu0 %v1822
        %v2160 = vpop.f32.mrf.mxu0
        %v2161 = vadd.f32 %v2048, %v2160
        %2162 = vmatmul.f32.gmra.mxu0 %v1825
        %v2163 = vpop.f32.mrf.mxu0
        %v2164 = vadd.f32 %v2051, %v2163
        %2165 = vmatmul.f32.gmra.mxu0 %v1828
        %v2166 = vpop.f32.mrf.mxu0
        %v2167 = vadd.f32 %v2054, %v2166
        %2168 = vmatmul.f32.gmra.mxu0 %v1831
        %v2169 = vpop.f32.mrf.mxu0
        %v2170 = vadd.f32 %v2057, %v2169
        %2171 = vmatmul.f32.gmra.mxu0 %v1834
        %v2172 = vpop.f32.mrf.mxu0
        %v2173 = vadd.f32 %v2060, %v2172
        %2174 = vmatmul.f32.gmra.mxu0 %v1837
        %v2175 = vpop.f32.mrf.mxu0
        %v2176 = vadd.f32 %v2063, %v2175
        %2177 = vmatmul.f32.gmra.mxu0 %v1840
        %v2178 = vpop.f32.mrf.mxu0
        %v2179 = vadd.f32 %v2066, %v2178
        %2180 = vmatmul.f32.gmra.mxu0 %v1843
        %v2181 = vpop.f32.mrf.mxu0
        %v2182 = vadd.f32 %v2069, %v2181
        %2183 = vmatmul.f32.gmra.mxu0 %v1846
        %v2184 = vpop.f32.mrf.mxu0
        %v2185 = vadd.f32 %v2072, %v2184
        %2186 = vmatmul.f32.gmra.mxu0 %v1849
        %v2187 = vpop.f32.mrf.mxu0
        %v2188 = vadd.f32 %v2075, %v2187
        %2189 = vmatmul.f32.gmra.mxu0 %v1852
        %v2190 = vpop.f32.mrf.mxu0
        %v2191 = vadd.f32 %v2078, %v2190
        %2192 = vmatmul.f32.gmra.mxu0 %v1855
        %v2193 = vpop.f32.mrf.mxu0
        %v2194 = vadd.f32 %v2081, %v2193
        %2195 = vmatmul.f32.gmra.mxu0 %v1858
        %v2196 = vpop.f32.mrf.mxu0
        %v2197 = vadd.f32 %v2084, %v2196
        %2198 = vmatmul.f32.gmra.mxu0 %v1861
        %v2199 = vpop.f32.mrf.mxu0
        %v2200 = vadd.f32 %v2087, %v2199
        %2201 = vmatmul.f32.gmra.mxu0 %v1864
        %v2202 = vpop.f32.mrf.mxu0
        %v2203 = vadd.f32 %v2090, %v2202
        %2204 = vmatmul.f32.gmra.mxu0 %v1867
        %v2205 = vpop.f32.mrf.mxu0
        %v2206 = vadd.f32 %v2093, %v2205
        %2207 = vmatmul.f32.gmra.mxu0 %v1870
        %v2208 = vpop.f32.mrf.mxu0
        %v2209 = vadd.f32 %v2096, %v2208
        %2210 = vmatmul.f32.gmra.mxu0 %v1873
        %v2211 = vpop.f32.mrf.mxu0
        %v2212 = vadd.f32 %v2099, %v2211
        %2213 = vmatmul.f32.gmra.mxu0 %v1876
        %v2214 = vpop.f32.mrf.mxu0
        %v2215 = vadd.f32 %v2102, %v2214
        %2216 = vmatmul.f32.gmra.mxu0 %v1879
        %v2217 = vpop.f32.mrf.mxu0
        %v2218 = vadd.f32 %v2105, %v2217
        %2219 = vmatmul.f32.gmra.mxu0 %v1882
        %v2220 = vpop.f32.mrf.mxu0
        %v2221 = vadd.f32 %v2108, %v2220
        %2222 = vmatmul.f32.gmra.mxu0 %v1885
        %v2223 = vpop.f32.mrf.mxu0
        %v2224 = vadd.f32 %v2111, %v2223
        %2225 = vmatmul.f32.gmra.mxu0 %v1888
        %v2226 = vpop.f32.mrf.mxu0
        %v2227 = vadd.f32 %v2114, %v2226
        %2228 = vmatmul.f32.gmra.mxu0 %v1891
        %v2229 = vpop.f32.mrf.mxu0
        %v2230 = vadd.f32 %v2117, %v2229
        %2231 = vmatmul.f32.gmra.mxu0 %v1894
        %v2232 = vpop.f32.mrf.mxu0
        %v2233 = vadd.f32 %v2120, %v2232
        %2234 = vmatmul.f32.gmra.mxu0 %v1897
        %v2235 = vpop.f32.mrf.mxu0
        %v2236 = vadd.f32 %v2123, %v2235
        %2237 = vmatmul.f32.gmra.mxu0 %v1900
        %v2238 = vpop.f32.mrf.mxu0
        %v2239 = vadd.f32 %v2126, %v2238
        %2240 = vmatmul.f32.gmra.mxu0 %v1903
        %v2241 = vpop.f32.mrf.mxu0
        %v2242 = vadd.f32 %v2129, %v2241
        %2243 = vmatmul.f32.gmra.mxu0 %v1906
        %v2244 = vpop.f32.mrf.mxu0
        %v2245 = vadd.f32 %v2132, %v2244
        %2246 = vmatmul.f32.gmra.mxu0 %v1909
        %v2247 = vpop.f32.mrf.mxu0
        %v2248 = vadd.f32 %v2135, %v2247
        %2249 = vmatmul.f32.gmra.mxu0 %v1912
        %v2250 = vpop.f32.mrf.mxu0
        %v2251 = vadd.f32 %v2138, %v2250
        %2252 = vdwg.mxu0
        %2253 = vst [vmem:[%s263] sm:$0xff] %v2158
        %2254 = vst [vmem:[%s263 + $0x8] sm:$0xff] %v2161
        %2255 = vst [vmem:[%s263 + $0x10] sm:$0xff] %v2164
        %2256 = vst [vmem:[%s263 + $0x18] sm:$0xff] %v2167
        %2257 = vst [vmem:[%s263 + $0x20] sm:$0xff] %v2170
        %2258 = vst [vmem:[%s263 + $0x28] sm:$0xff] %v2173
        %2259 = vst [vmem:[%s263 + $0x30] sm:$0xff] %v2176
        %2260 = vst [vmem:[%s263 + $0x38] sm:$0xff] %v2179
        %2261 = vst [vmem:[%s263 + $0x40] sm:$0xff] %v2182
        %2262 = vst [vmem:[%s263 + $0x48] sm:$0xff] %v2185
        %2263 = vst [vmem:[%s263 + $0x50] sm:$0xff] %v2188
        %2264 = vst [vmem:[%s263 + $0x58] sm:$0xff] %v2191
        %2265 = vst [vmem:[%s263 + $0x60] sm:$0xff] %v2194
        %2266 = vst [vmem:[%s263 + $0x68] sm:$0xff] %v2197
        %2267 = vst [vmem:[%s263 + $0x70] sm:$0xff] %v2200
        %2268 = vst [vmem:[%s263 + $0x78] sm:$0xff] %v2203
        %2269 = vst [vmem:[%s263 + $0x80] sm:$0xff] %v2206
        %2270 = vst [vmem:[%s263 + $0x88] sm:$0xff] %v2209
        %2271 = vst [vmem:[%s263 + $0x90] sm:$0xff] %v2212
        %2272 = vst [vmem:[%s263 + $0x98] sm:$0xff] %v2215
        %2273 = vst [vmem:[%s263 + $0xa0] sm:$0xff] %v2218
        %2274 = vst [vmem:[%s263 + $0xa8] sm:$0xff] %v2221
        %2275 = vst [vmem:[%s263 + $0xb0] sm:$0xff] %v2224
        %2276 = vst [vmem:[%s263 + $0xb8] sm:$0xff] %v2227
        %2277 = vst [vmem:[%s263 + $0xc0] sm:$0xff] %v2230
        %2278 = vst [vmem:[%s263 + $0xc8] sm:$0xff] %v2233
        %2279 = vst [vmem:[%s263 + $0xd0] sm:$0xff] %v2236
        %2280 = vst [vmem:[%s263 + $0xd8] sm:$0xff] %v2239
        %2281 = vst [vmem:[%s263 + $0xe0] sm:$0xff] %v2242
        %2282 = vst [vmem:[%s263 + $0xe8] sm:$0xff] %v2245
        %2283 = vst [vmem:[%s263 + $0xf0] sm:$0xff] %v2248
        %2284 = vst [vmem:[%s263 + $0xf8] sm:$0xff] %v2251
        %s2285 = sand.u32 %s140, 1
        %s2286 = scalar_lea.sflag [#allocation4], %s2285
        %s2287 = sand.u32 %s140, 1
        %s2288 = smul.addr %s2287, 256
        %s2289 = scalar_lea.vmem [#allocation5], %s2288
        %s2290 = smul.u32 32, %s22
        %p2291 = scmp.lt.s32.totalorder %s2290, 63
        %s2292 = scalar_select %p2291, %s2290, 63
        %s2293 = smul.addr %s2292, 8
        %s2294 = scalar_lea.vmem %s6, %s2293
        // Predicated region
        $region45: #{tpu_custom_call.1} parent=39 // pred_check
          %p2295 = pneg %p150
        $region46: #{tpu_custom_call.1} parent=39 // pred_check_branch
          %2297 = sbr.rel (%p2295) target = $region48
        $region47: #{tpu_custom_call.1} parent=39 // pred_region
          %s2298 = smul.u32 32, %s22
          %2300 = vsyncadd %s2286, 0
          %s2301 = smul.addr %s2298, 8
          %s2302 = scalar_lea.hbm %s5, %s2301
          %s2303 = sshll.u32 %s2289, 4
          %s2304 = int_to_ptr.vmem [resolvable:$true] %s2303
          %s2305 = sshll.u32 %s2302, 4
          %s2306 = int_to_ptr.hbm [resolvable:$true] %s2305
          %2311 = dma.vmem_to_hbm [thread:$0]  %s2304, 4096, %s2306, %s2286, 128, 128, 8
        $region48: #{tpu_custom_call.1} parent=39 // pred_fallthru
          _
        // Predicated region
        $region49: #{tpu_custom_call.1} parent=39 // pred_check
          %p2312 = pneg %p176
        $region50: #{tpu_custom_call.1} parent=39 // pred_check_branch
          %2314 = sbr.rel (%p2312) target = $region52
        $region51: #{tpu_custom_call.1} parent=39 // pred_region
          %s2315 = smul.u32 32, %s22
        $region52: #{tpu_custom_call.1} parent=39 // pred_fallthru
          _
      $region40: #{tpu_custom_call.1} parent=5 // pred_fallthru
        _
      %p2316 = scmp.le.s32.totalorder 2, %s17
      // Predicated region
      $region53: #{tpu_custom_call.1} parent=5 // pred_check
        %p2317 = pneg %p2316
      $region54: #{tpu_custom_call.1} parent=5 // pred_check_branch
        %2319 = sbr.rel (%p2317) target = $region56
      $region55: #{tpu_custom_call.1} parent=5 // pred_region
        %s2320 = ssub.s32 %s17, 2
        // Predicated region
        $region57: #{tpu_custom_call.1} parent=55 // pred_check
          %p2321 = pneg %p156
        $region58: #{tpu_custom_call.1} parent=55 // pred_check_branch
          %2323 = sbr.rel (%p2321) target = $region60
        $region59: #{tpu_custom_call.1} parent=55 // pred_region
          %s2324 = sand.u32 %s141, 1
          %s2325 = scalar_lea.sflag [#allocation4], %s2324
          %s2326 = sand.u32 %s141, 1
          %s2327 = smul.addr %s2326, 256
          %s2328 = scalar_lea.vmem [#allocation5], %s2327
          %2330 = dma.done %s2325, 4096
        $region60: #{tpu_custom_call.1} parent=55 // pred_fallthru
          _
        // Predicated region
        $region61: #{tpu_custom_call.1} parent=55 // pred_check
          %p2331 = pneg %p182
        $region62: #{tpu_custom_call.1} parent=55 // pred_check_branch
          %2333 = sbr.rel (%p2331) target = $region64
        $region63: #{tpu_custom_call.1} parent=55 // pred_region
          %s2334 = smul.u32 32, %s23
          %p2335 = scmp.lt.s32.totalorder %s2334, 63
          %s2336 = scalar_select %p2335, %s2334, 63
          %s2337 = smul.addr %s2336, 8
          %s2338 = scalar_lea.vmem %s6, %s2337
        $region64: #{tpu_custom_call.1} parent=55 // pred_fallthru
          _
      $region56: #{tpu_custom_call.1} parent=5 // pred_fallthru
        _
    $region6: #{tpu_custom_call.1} parent=1 // loop_footer
      %s21 = sadd.s32 1, %s17
    $region7: #{tpu_custom_call.1} parent=1 // loop_footer_branch
      %16 = sbr.rel target = $region3
    $region8: #{tpu_custom_call.1} parent=1 // loop_exit
      _
    %2339 = vsyncpa [#allocation3], 1
    %s2340 = scalar_lea.sflag [#allocation3], 1
    %2341 = vsyncpa %s2340, 1
    %2342 = vsyncpa [#allocation4], 1
    %s2343 = scalar_lea.sflag [#allocation4], 1
    %2344 = vsyncpa %s2343, 1

</llo_original>
